<compile_context>
chip_gen: v7x
topology: tpu7x:2x2x1
jax: 0.10.0
libtpu: 0.0.40
codegen_flags: <defaults>
</compile_context>

<pallas_src>
import functools

import numpy as np
import jax
import jax.numpy as jnp
from jax import lax
from jax.experimental import pallas as pl
from jax.experimental.pallas import tpu as pltpu


def _round_up(x, m):
    return (x + m - 1) // m * m


# ------------------------------ Pallas kernel ------------------------------ #

def _fused_kernel(p1_ref, w1_ref, b1_ref, w2_ref, b2_ref, o_ref, z_ref, *,
                  gr, wp, k2, oh2, ow2, ck):
    """conv1 + 2x2 max-pool + ReLU + conv2 for one batch element.

    p1_ref : (4*gr, kkc1p)   pool-offset-stacked, zero-padded conv1 im2col
    w1_ref : (kkc1p, c1p)    b1_ref : (1, c1p)
    w2_ref : (k2*k2*ck, c2p) compact conv2 weight, per-tap blocks of ck rows
    b2_ref : (1, c2p)
    o_ref  : (oh2*ow2, c2p)
    z_ref  : VMEM scratch (gr, c1p) -- pooled + ReLU conv1 activation
    """
    c2p = o_ref.shape[-1]
    nacc = (oh2 - 1) * wp + ow2          # rows of the conv2 accumulator

    # conv1: one MXU dot over all four 2x2-pool offsets at once.
    big = jnp.dot(p1_ref[...], w1_ref[...], preferred_element_type=jnp.float32)

    # 2x2 max-pool = max over the four gr-row groups (8-aligned value slices).
    m = jnp.maximum(jnp.maximum(big[0 * gr:1 * gr], big[1 * gr:2 * gr]),
                    jnp.maximum(big[2 * gr:3 * gr], big[3 * gr:4 * gr]))
    # Per-channel bias after the max is equivalent: max(a+b, c+b) = max(a,c)+b.
    # NOTE: z rows >= hp*wp (the sublane padding, rows 36..39 here) end up as
    # relu(b1) rather than 0; they are provably never read below -- the max z
    # row touched is (k2-1)*(wp+1) + nacc - 1 < hp*wp (asserted in wrapper).
    z_ref[...] = jnp.maximum(m + b1_ref[...], 0.0)

    # conv2: 25 accumulating MXU dots straight from z -- no im2col scratch and
    # no masked sub-vreg stores.  acc[s] is conv2 evaluated at flattened
    # pooled-map position s; only rows {oh*wp + ow} are real outputs.
    acc = jnp.zeros((nacc, c2p), jnp.float32)
    for ki in range(k2):
        for kj in range(k2):
            q = ki * k2 + kj             # tap index -> compact weight block
            r = ki * wp + kj             # z-row offset of this tap
            acc = acc + jnp.dot(z_ref[r:r + nacc, 0:ck],
                                w2_ref[q * ck:(q + 1) * ck, :],
                                preferred_element_type=jnp.float32)

    rows = jnp.concatenate(
        [acc[oh * wp: oh * wp + ow2] for oh in range(oh2)], axis=0)
    o_ref[...] = rows + b2_ref[...]


# --------------------------------- glue ------------------------------------ #

def _im2col(x_nhwc, k):
    """(N, H, W, C) -> (N, Ho, Wo, k*k*C) with patch entry order (kh, kw, c)."""
    n, h, w, c = x_nhwc.shape
    ho, wo = h - k + 1, w - k + 1
    cols = [x_nhwc[:, ki:ki + ho, kj:kj + wo, :]
            for ki in range(k) for kj in range(k)]
    return jnp.concatenate(cols, axis=-1)


def make_net_prune(w1, b1, w2, b2):
    """Build a jitted forward(x).  All weight reformatting happens here, once,
    on the host (numpy) -- only x-side glue + the Pallas call are traced."""
    w1 = np.asarray(w1, np.float32)
    b1 = np.asarray(b1, np.float32)
    w2 = np.asarray(w2, np.float32)
    b2 = np.asarray(b2, np.float32)

    c1, cin, k1, _ = w1.shape
    c2, _, k2, _ = w2.shape

    kkc1 = k1 * k1 * cin
    kkc1p = _round_up(kkc1, 128)          # conv1 contraction dim (lane-padded)
    c1p = _round_up(c1, 128)              # conv1 out channels (lane-padded)
    c2p = _round_up(c2, 128)              # conv2 out channels (lane-padded)
    ck = _round_up(c1, 8)                 # compact per-tap conv2 contraction

    # conv1 weight in (kh, kw, cin, cout) im2col order, zero-padded.
    w1_mat = np.zeros((kkc1p, c1p), np.float32)
    w1_mat[:kkc1, :c1] = w1.transpose(2, 3, 1, 0).reshape(kkc1, c1)
    b1_mat = np.zeros((1, c1p), np.float32)
    b1_mat[0, :c1] = b1

    # conv2 weight, compact: k2*k2 per-tap blocks of ck rows (cin 10 -> 16).
    w2c_mat = np.zeros((k2 * k2 * ck, c2p), np.float32)
    w2_t = w2.transpose(2, 3, 1, 0)                      # (kh, kw, cin, cout)
    for ki in range(k2):
        for kj in range(k2):
            q = ki * k2 + kj
            w2c_mat[q * ck: q * ck + c1, :c2] = w2_t[ki, kj]
    b2_mat = np.zeros((1, c2p), np.float32)
    b2_mat[0, :c2] = b2

    w1_mat, b1_mat, w2c_mat, b2_mat = map(
        jnp.asarray, (w1_mat, b1_mat, w2c_mat, b2_mat))

    @jax.jit
    def forward(x_nchw):
        n, cin_x, h, w = x_nchw.shape
        assert cin_x == cin
        h1, w1o = h - k1 + 1, w - k1 + 1     # conv1 output
        hp, wp = h1 // 2, w1o // 2           # after 2x2 max pool (stride 2)
        oh2, ow2 = hp - k2 + 1, wp - k2 + 1  # conv2 output
        gr = _round_up(hp * wp, 8)           # 8-aligned rows per pool group
        nacc = (oh2 - 1) * wp + ow2
        # Never read the padded (relu(b1)) z rows in the conv2 acc-dots.
        assert (k2 - 1) * (wp + 1) + nacc <= hp * wp

        # conv1 im2col + four 2x2-pool-window shifted variants, zero-padded to
        # lane/sublane-aligned shapes (small x-side glue; see TODO above).
        x_nhwc = jnp.transpose(x_nchw, (0, 2, 3, 1)).astype(jnp.float32)
        p1 = _im2col(x_nhwc, k1)                          # (n, h1, w1o, kkc1)
        groups = jnp.stack(
            [p1[:, di::2, dj::2, :].reshape(n, hp * wp, kkc1)
             for di in (0, 1) for dj in (0, 1)], axis=1)  # (n,4,hp*wp,kkc1)
        groups = jnp.pad(groups, ((0, 0), (0, 0),
                                  (0, gr - hp * wp), (0, kkc1p - kkc1)))
        p1_mat = groups.reshape(n, 4 * gr, kkc1p)

        kernel = functools.partial(_fused_kernel, gr=gr, wp=wp, k2=k2,
                                   oh2=oh2, ow2=ow2, ck=ck)

        flops = n * (2 * (4 * gr) * kkc1p * c1p
                     + 2 * k2 * k2 * nacc * ck * c2p)
        bytes_accessed = 4 * (n * 4 * gr * kkc1p + kkc1p * c1p + c1p
                              + k2 * k2 * ck * c2p + c2p
                              + n * oh2 * ow2 * c2p)

        y = pl.pallas_call(
            kernel,
            out_shape=jax.ShapeDtypeStruct((n, oh2 * ow2, c2p), jnp.float32),
            grid=(n,),
            in_specs=[
                pl.BlockSpec((None, 4 * gr, kkc1p), lambda b: (b, 0, 0)),
                # Weight/bias index maps are constant -> DMA'd once for the
                # whole grid and kept VMEM-resident.
                pl.BlockSpec((kkc1p, c1p), lambda b: (0, 0)),
                pl.BlockSpec((1, c1p), lambda b: (0, 0)),
                pl.BlockSpec((k2 * k2 * ck, c2p), lambda b: (0, 0)),
                pl.BlockSpec((1, c2p), lambda b: (0, 0)),
            ],
            out_specs=pl.BlockSpec((None, oh2 * ow2, c2p),
                                   lambda b: (b, 0, 0)),
            scratch_shapes=[pltpu.VMEM((gr, c1p), jnp.float32)],
            compiler_params=pltpu.CompilerParams(
                dimension_semantics=("parallel",)),
            cost_estimate=pl.CostEstimate(
                flops=flops, transcendentals=0,
                bytes_accessed=bytes_accessed),
        )(p1_mat, w1_mat, b1_mat, w2c_mat, b2_mat)

        y = y[:, :, :c2].reshape(n, oh2, ow2, c2)
        return jnp.transpose(y, (0, 3, 1, 2))             # back to NCHW

    return forward


# ------------------------------ reference ---------------------------------- #

def reference(x, w1, b1, w2, b2):
    y1 = lax.conv_general_dilated(x, w1, (1, 1), "VALID",
                                  dimension_numbers=("NCHW", "OIHW", "NCHW"))
    y1 = y1 + b1[None, :, None, None]
    y1 = lax.reduce_window(y1, -jnp.inf, lax.max,
                           (1, 1, 2, 2), (1, 1, 2, 2), "VALID")
    y1 = jnp.maximum(y1, 0.0)
    y2 = lax.conv_general_dilated(y1, w2, (1, 1), "VALID",
                                  dimension_numbers=("NCHW", "OIHW", "NCHW"))
    return y2 + b2[None, :, None, None]


if __name__ == "__main__":
    key = jax.random.PRNGKey(0)
    kx, kw1, kb1, kw2, kb2 = jax.random.split(key, 5)

    # conv1: Cin->10, k=5 ; conv2: 10->20, k=5 ; input (2, 4, 16, 16).
    N, CIN, H, W = 2, 4, 16, 16
    C1, C2, K = 10, 20, 5

    x = jax.random.normal(kx, (N, CIN, H, W), jnp.float32)
    w1 = jax.random.normal(kw1, (C1, CIN, K, K), jnp.float32) * 0.1
    b1 = jax.random.normal(kb1, (C1,), jnp.float32) * 0.1
    w2 = jax.random.normal(kw2, (C2, C1, K, K), jnp.float32) * 0.1
    b2 = jax.random.normal(kb2, (C2,), jnp.float32) * 0.1

    forward = make_net_prune(w1, b1, w2, b2)   # one-time host-side weight prep
    out = jax.block_until_ready(forward(x))

    ref = reference(x, w1, b1, w2, b2)
    assert out.shape == (N, C2, 2, 2), out.shape
    err = float(jnp.max(jnp.abs(out - ref)))
    assert jnp.allclose(out, ref, atol=1e-4, rtol=1e-4), err

    print("KERNEL_OK")
</pallas_src>

<mosaic_0001>
module attributes {stable_mosaic.version = 11 : i64} {
  func.func @_fused_kernel(%arg0: i32, %arg1: memref<1x160x128xf32, #tpu.memory_space<vmem>>, %arg2: memref<128x128xf32, #tpu.memory_space<vmem>>, %arg3: memref<1x128xf32, #tpu.memory_space<vmem>>, %arg4: memref<400x128xf32, #tpu.memory_space<vmem>>, %arg5: memref<1x128xf32, #tpu.memory_space<vmem>>, %arg6: memref<1x4x128xf32, #tpu.memory_space<vmem>>, %arg7: memref<40x128xf32, #tpu.memory_space<vmem>>) attributes {dimension_semantics = [#tpu.dimension_semantics<parallel>], iteration_bounds = array<i64: 2>, scalar_prefetch = 0 : i64, scratch_operands = 1 : i64, tpu.core_type = #tpu.core_type<tc>, window_params = [{transform_indices = @transform_0, window_bounds = array<i64: 1, 160, 128>}, {pipeline_mode = #tpu.pipeline_mode<synchronous>, transform_indices = @transform_1, window_bounds = array<i64: 128, 128>}, {pipeline_mode = #tpu.pipeline_mode<synchronous>, transform_indices = @transform_2, window_bounds = array<i64: 1, 128>}, {pipeline_mode = #tpu.pipeline_mode<synchronous>, transform_indices = @transform_3, window_bounds = array<i64: 400, 128>}, {pipeline_mode = #tpu.pipeline_mode<synchronous>, transform_indices = @transform_4, window_bounds = array<i64: 1, 128>}, {transform_indices = @transform_5, window_bounds = array<i64: 1, 4, 128>}]} {
    %c0 = arith.constant 0 : index
    %c0_0 = arith.constant 0 : index
    %c0_1 = arith.constant 0 : index
    %0 = vector.load %arg1[%c0, %c0_0, %c0_1] : memref<1x160x128xf32, #tpu.memory_space<vmem>>, vector<1x160x128xf32>
    %1 = vector.shape_cast %0 : vector<1x160x128xf32> to vector<160x128xf32>
    %c0_2 = arith.constant 0 : index
    %c0_3 = arith.constant 0 : index
    %2 = vector.load %arg2[%c0_2, %c0_3] : memref<128x128xf32, #tpu.memory_space<vmem>>, vector<128x128xf32>
    %cst = arith.constant dense<0.000000e+00> : vector<160x128xf32>
    %3 = tpu.matmul %1, %2, %cst {dimension_numbers = #tpu.dot_dimension_numbers<[1], [0], [0], [1], [0, 0, 1, 1], [], []>} : vector<160x128xf32>, vector<128x128xf32>, vector<160x128xf32> -> vector<160x128xf32>
    %4 = vector.extract_strided_slice %3 {offsets = [0, 0], sizes = [40, 128], strides = [1, 1]} : vector<160x128xf32> to vector<40x128xf32>
    %5 = vector.extract_strided_slice %3 {offsets = [40, 0], sizes = [40, 128], strides = [1, 1]} : vector<160x128xf32> to vector<40x128xf32>
    %6 = arith.maximumf %4, %5 : vector<40x128xf32>
    %7 = vector.extract_strided_slice %3 {offsets = [80, 0], sizes = [40, 128], strides = [1, 1]} : vector<160x128xf32> to vector<40x128xf32>
    %8 = vector.extract_strided_slice %3 {offsets = [120, 0], sizes = [40, 128], strides = [1, 1]} : vector<160x128xf32> to vector<40x128xf32>
    %9 = arith.maximumf %7, %8 : vector<40x128xf32>
    %10 = arith.maximumf %6, %9 : vector<40x128xf32>
    %c0_4 = arith.constant 0 : index
    %c0_5 = arith.constant 0 : index
    %11 = vector.load %arg3[%c0_4, %c0_5] : memref<1x128xf32, #tpu.memory_space<vmem>>, vector<1x128xf32>
    %12 = vector.broadcast %11 : vector<1x128xf32> to vector<40x128xf32>
    %13 = arith.addf %10, %12 : vector<40x128xf32>
    %cst_6 = arith.constant 0.000000e+00 : f32
    %14 = vector.broadcast %cst_6 : f32 to vector<40x128xf32>
    %15 = arith.maximumf %13, %14 : vector<40x128xf32>
    %c0_7 = arith.constant 0 : index
    %c0_8 = arith.constant 0 : index
    %16 = vector.load %arg7[%c0_7, %c0_8] : memref<40x128xf32, #tpu.memory_space<vmem>>, vector<40x128xf32>
    tpu.vector_store %arg7[%c0_7, %c0_8], %15 {strides = array<i32>} : memref<40x128xf32, #tpu.memory_space<vmem>>, vector<40x128xf32>,
    %cst_9 = arith.constant 0.000000e+00 : f32
    %17 = vector.broadcast %cst_9 : f32 to vector<8x128xf32>
    %c0_10 = arith.constant 0 : index
    %c0_11 = arith.constant 0 : index
    %18 = vector.load %arg7[%c0_10, %c0_11] : memref<40x128xf32, #tpu.memory_space<vmem>>, vector<8x16xf32>
    %c0_12 = arith.constant 0 : index
    %c0_13 = arith.constant 0 : index
    %19 = vector.load %arg4[%c0_12, %c0_13] : memref<400x128xf32, #tpu.memory_space<vmem>>, vector<16x128xf32>
    %cst_14 = arith.constant dense<0.000000e+00> : vector<8x128xf32>
    %20 = tpu.matmul %18, %19, %cst_14 {dimension_numbers = #tpu.dot_dimension_numbers<[1], [0], [0], [1], [0, 0, 1, 1], [], []>} : vector<8x16xf32>, vector<16x128xf32>, vector<8x128xf32> -> vector<8x128xf32>
    %21 = arith.addf %17, %20 : vector<8x128xf32>
    %c1 = arith.constant 1 : index
    %c0_15 = arith.constant 0 : index
    %22 = vector.load %arg7[%c1, %c0_15] : memref<40x128xf32, #tpu.memory_space<vmem>>, vector<8x16xf32>
    %c16 = arith.constant 16 : index
    %c0_16 = arith.constant 0 : index
    %23 = vector.load %arg4[%c16, %c0_16] : memref<400x128xf32, #tpu.memory_space<vmem>>, vector<16x128xf32>
    %cst_17 = arith.constant dense<0.000000e+00> : vector<8x128xf32>
    %24 = tpu.matmul %22, %23, %cst_17 {dimension_numbers = #tpu.dot_dimension_numbers<[1], [0], [0], [1], [0, 0, 1, 1], [], []>} : vector<8x16xf32>, vector<16x128xf32>, vector<8x128xf32> -> vector<8x128xf32>
    %25 = arith.addf %21, %24 : vector<8x128xf32>
    %c2 = arith.constant 2 : index
    %c0_18 = arith.constant 0 : index
    %26 = vector.load %arg7[%c2, %c0_18] : memref<40x128xf32, #tpu.memory_space<vmem>>, vector<8x16xf32>
    %c32 = arith.constant 32 : index
    %c0_19 = arith.constant 0 : index
    %27 = vector.load %arg4[%c32, %c0_19] : memref<400x128xf32, #tpu.memory_space<vmem>>, vector<16x128xf32>
    %cst_20 = arith.constant dense<0.000000e+00> : vector<8x128xf32>
    %28 = tpu.matmul %26, %27, %cst_20 {dimension_numbers = #tpu.dot_dimension_numbers<[1], [0], [0], [1], [0, 0, 1, 1], [], []>} : vector<8x16xf32>, vector<16x128xf32>, vector<8x128xf32> -> vector<8x128xf32>
    %29 = arith.addf %25, %28 : vector<8x128xf32>
    %c3 = arith.constant 3 : index
    %c0_21 = arith.constant 0 : index
    %30 = vector.load %arg7[%c3, %c0_21] : memref<40x128xf32, #tpu.memory_space<vmem>>, vector<8x16xf32>
    %c48 = arith.constant 48 : index
    %c0_22 = arith.constant 0 : index
    %31 = vector.load %arg4[%c48, %c0_22] : memref<400x128xf32, #tpu.memory_space<vmem>>, vector<16x128xf32>
    %cst_23 = arith.constant dense<0.000000e+00> : vector<8x128xf32>
    %32 = tpu.matmul %30, %31, %cst_23 {dimension_numbers = #tpu.dot_dimension_numbers<[1], [0], [0], [1], [0, 0, 1, 1], [], []>} : vector<8x16xf32>, vector<16x128xf32>, vector<8x128xf32> -> vector<8x128xf32>
    %33 = arith.addf %29, %32 : vector<8x128xf32>
    %c4 = arith.constant 4 : index
    %c0_24 = arith.constant 0 : index
    %34 = vector.load %arg7[%c4, %c0_24] : memref<40x128xf32, #tpu.memory_space<vmem>>, vector<8x16xf32>
    %c64 = arith.constant 64 : index
    %c0_25 = arith.constant 0 : index
    %35 = vector.load %arg4[%c64, %c0_25] : memref<400x128xf32, #tpu.memory_space<vmem>>, vector<16x128xf32>
    %cst_26 = arith.constant dense<0.000000e+00> : vector<8x128xf32>
    %36 = tpu.matmul %34, %35, %cst_26 {dimension_numbers = #tpu.dot_dimension_numbers<[1], [0], [0], [1], [0, 0, 1, 1], [], []>} : vector<8x16xf32>, vector<16x128xf32>, vector<8x128xf32> -> vector<8x128xf32>
    %37 = arith.addf %33, %36 : vector<8x128xf32>
    %c6 = arith.constant 6 : index
    %c0_27 = arith.constant 0 : index
    %38 = vector.load %arg7[%c6, %c0_27] : memref<40x128xf32, #tpu.memory_space<vmem>>, vector<8x16xf32>
    %c80 = arith.constant 80 : index
    %c0_28 = arith.constant 0 : index
    %39 = vector.load %arg4[%c80, %c0_28] : memref<400x128xf32, #tpu.memory_space<vmem>>, vector<16x128xf32>
    %cst_29 = arith.constant dense<0.000000e+00> : vector<8x128xf32>
    %40 = tpu.matmul %38, %39, %cst_29 {dimension_numbers = #tpu.dot_dimension_numbers<[1], [0], [0], [1], [0, 0, 1, 1], [], []>} : vector<8x16xf32>, vector<16x128xf32>, vector<8x128xf32> -> vector<8x128xf32>
    %41 = arith.addf %37, %40 : vector<8x128xf32>
    %c7 = arith.constant 7 : index
    %c0_30 = arith.constant 0 : index
    %42 = vector.load %arg7[%c7, %c0_30] : memref<40x128xf32, #tpu.memory_space<vmem>>, vector<8x16xf32>
    %c96 = arith.constant 96 : index
    %c0_31 = arith.constant 0 : index
    %43 = vector.load %arg4[%c96, %c0_31] : memref<400x128xf32, #tpu.memory_space<vmem>>, vector<16x128xf32>
    %cst_32 = arith.constant dense<0.000000e+00> : vector<8x128xf32>
    %44 = tpu.matmul %42, %43, %cst_32 {dimension_numbers = #tpu.dot_dimension_numbers<[1], [0], [0], [1], [0, 0, 1, 1], [], []>} : vector<8x16xf32>, vector<16x128xf32>, vector<8x128xf32> -> vector<8x128xf32>
    %45 = arith.addf %41, %44 : vector<8x128xf32>
    %c8 = arith.constant 8 : index
    %c0_33 = arith.constant 0 : index
    %46 = vector.load %arg7[%c8, %c0_33] : memref<40x128xf32, #tpu.memory_space<vmem>>, vector<8x16xf32>
    %c112 = arith.constant 112 : index
    %c0_34 = arith.constant 0 : index
    %47 = vector.load %arg4[%c112, %c0_34] : memref<400x128xf32, #tpu.memory_space<vmem>>, vector<16x128xf32>
    %cst_35 = arith.constant dense<0.000000e+00> : vector<8x128xf32>
    %48 = tpu.matmul %46, %47, %cst_35 {dimension_numbers = #tpu.dot_dimension_numbers<[1], [0], [0], [1], [0, 0, 1, 1], [], []>} : vector<8x16xf32>, vector<16x128xf32>, vector<8x128xf32> -> vector<8x128xf32>
    %49 = arith.addf %45, %48 : vector<8x128xf32>
    %c9 = arith.constant 9 : index
    %c0_36 = arith.constant 0 : index
    %50 = vector.load %arg7[%c9, %c0_36] : memref<40x128xf32, #tpu.memory_space<vmem>>, vector<8x16xf32>
    %c128 = arith.constant 128 : index
    %c0_37 = arith.constant 0 : index
    %51 = vector.load %arg4[%c128, %c0_37] : memref<400x128xf32, #tpu.memory_space<vmem>>, vector<16x128xf32>
    %cst_38 = arith.constant dense<0.000000e+00> : vector<8x128xf32>
    %52 = tpu.matmul %50, %51, %cst_38 {dimension_numbers = #tpu.dot_dimension_numbers<[1], [0], [0], [1], [0, 0, 1, 1], [], []>} : vector<8x16xf32>, vector<16x128xf32>, vector<8x128xf32> -> vector<8x128xf32>
    %53 = arith.addf %49, %52 : vector<8x128xf32>
    %c10 = arith.constant 10 : index
    %c0_39 = arith.constant 0 : index
    %54 = vector.load %arg7[%c10, %c0_39] : memref<40x128xf32, #tpu.memory_space<vmem>>, vector<8x16xf32>
    %c144 = arith.constant 144 : index
    %c0_40 = arith.constant 0 : index
    %55 = vector.load %arg4[%c144, %c0_40] : memref<400x128xf32, #tpu.memory_space<vmem>>, vector<16x128xf32>
    %cst_41 = arith.constant dense<0.000000e+00> : vector<8x128xf32>
    %56 = tpu.matmul %54, %55, %cst_41 {dimension_numbers = #tpu.dot_dimension_numbers<[1], [0], [0], [1], [0, 0, 1, 1], [], []>} : vector<8x16xf32>, vector<16x128xf32>, vector<8x128xf32> -> vector<8x128xf32>
    %57 = arith.addf %53, %56 : vector<8x128xf32>
    %c12 = arith.constant 12 : index
    %c0_42 = arith.constant 0 : index
    %58 = vector.load %arg7[%c12, %c0_42] : memref<40x128xf32, #tpu.memory_space<vmem>>, vector<8x16xf32>
    %c160 = arith.constant 160 : index
    %c0_43 = arith.constant 0 : index
    %59 = vector.load %arg4[%c160, %c0_43] : memref<400x128xf32, #tpu.memory_space<vmem>>, vector<16x128xf32>
    %cst_44 = arith.constant dense<0.000000e+00> : vector<8x128xf32>
    %60 = tpu.matmul %58, %59, %cst_44 {dimension_numbers = #tpu.dot_dimension_numbers<[1], [0], [0], [1], [0, 0, 1, 1], [], []>} : vector<8x16xf32>, vector<16x128xf32>, vector<8x128xf32> -> vector<8x128xf32>
    %61 = arith.addf %57, %60 : vector<8x128xf32>
    %c13 = arith.constant 13 : index
    %c0_45 = arith.constant 0 : index
    %62 = vector.load %arg7[%c13, %c0_45] : memref<40x128xf32, #tpu.memory_space<vmem>>, vector<8x16xf32>
    %c176 = arith.constant 176 : index
    %c0_46 = arith.constant 0 : index
    %63 = vector.load %arg4[%c176, %c0_46] : memref<400x128xf32, #tpu.memory_space<vmem>>, vector<16x128xf32>
    %cst_47 = arith.constant dense<0.000000e+00> : vector<8x128xf32>
    %64 = tpu.matmul %62, %63, %cst_47 {dimension_numbers = #tpu.dot_dimension_numbers<[1], [0], [0], [1], [0, 0, 1, 1], [], []>} : vector<8x16xf32>, vector<16x128xf32>, vector<8x128xf32> -> vector<8x128xf32>
    %65 = arith.addf %61, %64 : vector<8x128xf32>
    %c14 = arith.constant 14 : index
    %c0_48 = arith.constant 0 : index
    %66 = vector.load %arg7[%c14, %c0_48] : memref<40x128xf32, #tpu.memory_space<vmem>>, vector<8x16xf32>
    %c192 = arith.constant 192 : index
    %c0_49 = arith.constant 0 : index
    %67 = vector.load %arg4[%c192, %c0_49] : memref<400x128xf32, #tpu.memory_space<vmem>>, vector<16x128xf32>
    %cst_50 = arith.constant dense<0.000000e+00> : vector<8x128xf32>
    %68 = tpu.matmul %66, %67, %cst_50 {dimension_numbers = #tpu.dot_dimension_numbers<[1], [0], [0], [1], [0, 0, 1, 1], [], []>} : vector<8x16xf32>, vector<16x128xf32>, vector<8x128xf32> -> vector<8x128xf32>
    %69 = arith.addf %65, %68 : vector<8x128xf32>
    %c15 = arith.constant 15 : index
    %c0_51 = arith.constant 0 : index
    %70 = vector.load %arg7[%c15, %c0_51] : memref<40x128xf32, #tpu.memory_space<vmem>>, vector<8x16xf32>
    %c208 = arith.constant 208 : index
    %c0_52 = arith.constant 0 : index
    %71 = vector.load %arg4[%c208, %c0_52] : memref<400x128xf32, #tpu.memory_space<vmem>>, vector<16x128xf32>
    %cst_53 = arith.constant dense<0.000000e+00> : vector<8x128xf32>
    %72 = tpu.matmul %70, %71, %cst_53 {dimension_numbers = #tpu.dot_dimension_numbers<[1], [0], [0], [1], [0, 0, 1, 1], [], []>} : vector<8x16xf32>, vector<16x128xf32>, vector<8x128xf32> -> vector<8x128xf32>
    %73 = arith.addf %69, %72 : vector<8x128xf32>
    %c16_54 = arith.constant 16 : index
    %c0_55 = arith.constant 0 : index
    %74 = vector.load %arg7[%c16_54, %c0_55] : memref<40x128xf32, #tpu.memory_space<vmem>>, vector<8x16xf32>
    %c224 = arith.constant 224 : index
    %c0_56 = arith.constant 0 : index
    %75 = vector.load %arg4[%c224, %c0_56] : memref<400x128xf32, #tpu.memory_space<vmem>>, vector<16x128xf32>
    %cst_57 = arith.constant dense<0.000000e+00> : vector<8x128xf32>
    %76 = tpu.matmul %74, %75, %cst_57 {dimension_numbers = #tpu.dot_dimension_numbers<[1], [0], [0], [1], [0, 0, 1, 1], [], []>} : vector<8x16xf32>, vector<16x128xf32>, vector<8x128xf32> -> vector<8x128xf32>
    %77 = arith.addf %73, %76 : vector<8x128xf32>
    %c18 = arith.constant 18 : index
    %c0_58 = arith.constant 0 : index
    %78 = vector.load %arg7[%c18, %c0_58] : memref<40x128xf32, #tpu.memory_space<vmem>>, vector<8x16xf32>
    %c240 = arith.constant 240 : index
    %c0_59 = arith.constant 0 : index
    %79 = vector.load %arg4[%c240, %c0_59] : memref<400x128xf32, #tpu.memory_space<vmem>>, vector<16x128xf32>
    %cst_60 = arith.constant dense<0.000000e+00> : vector<8x128xf32>
    %80 = tpu.matmul %78, %79, %cst_60 {dimension_numbers = #tpu.dot_dimension_numbers<[1], [0], [0], [1], [0, 0, 1, 1], [], []>} : vector<8x16xf32>, vector<16x128xf32>, vector<8x128xf32> -> vector<8x128xf32>
    %81 = arith.addf %77, %80 : vector<8x128xf32>
    %c19 = arith.constant 19 : index
    %c0_61 = arith.constant 0 : index
    %82 = vector.load %arg7[%c19, %c0_61] : memref<40x128xf32, #tpu.memory_space<vmem>>, vector<8x16xf32>
    %c256 = arith.constant 256 : index
    %c0_62 = arith.constant 0 : index
    %83 = vector.load %arg4[%c256, %c0_62] : memref<400x128xf32, #tpu.memory_space<vmem>>, vector<16x128xf32>
    %cst_63 = arith.constant dense<0.000000e+00> : vector<8x128xf32>
    %84 = tpu.matmul %82, %83, %cst_63 {dimension_numbers = #tpu.dot_dimension_numbers<[1], [0], [0], [1], [0, 0, 1, 1], [], []>} : vector<8x16xf32>, vector<16x128xf32>, vector<8x128xf32> -> vector<8x128xf32>
    %85 = arith.addf %81, %84 : vector<8x128xf32>
    %c20 = arith.constant 20 : index
    %c0_64 = arith.constant 0 : index
    %86 = vector.load %arg7[%c20, %c0_64] : memref<40x128xf32, #tpu.memory_space<vmem>>, vector<8x16xf32>
    %c272 = arith.constant 272 : index
    %c0_65 = arith.constant 0 : index
    %87 = vector.load %arg4[%c272, %c0_65] : memref<400x128xf32, #tpu.memory_space<vmem>>, vector<16x128xf32>
    %cst_66 = arith.constant dense<0.000000e+00> : vector<8x128xf32>
    %88 = tpu.matmul %86, %87, %cst_66 {dimension_numbers = #tpu.dot_dimension_numbers<[1], [0], [0], [1], [0, 0, 1, 1], [], []>} : vector<8x16xf32>, vector<16x128xf32>, vector<8x128xf32> -> vector<8x128xf32>
    %89 = arith.addf %85, %88 : vector<8x128xf32>
    %c21 = arith.constant 21 : index
    %c0_67 = arith.constant 0 : index
    %90 = vector.load %arg7[%c21, %c0_67] : memref<40x128xf32, #tpu.memory_space<vmem>>, vector<8x16xf32>
    %c288 = arith.constant 288 : index
    %c0_68 = arith.constant 0 : index
    %91 = vector.load %arg4[%c288, %c0_68] : memref<400x128xf32, #tpu.memory_space<vmem>>, vector<16x128xf32>
    %cst_69 = arith.constant dense<0.000000e+00> : vector<8x128xf32>
    %92 = tpu.matmul %90, %91, %cst_69 {dimension_numbers = #tpu.dot_dimension_numbers<[1], [0], [0], [1], [0, 0, 1, 1], [], []>} : vector<8x16xf32>, vector<16x128xf32>, vector<8x128xf32> -> vector<8x128xf32>
    %93 = arith.addf %89, %92 : vector<8x128xf32>
    %c22 = arith.constant 22 : index
    %c0_70 = arith.constant 0 : index
    %94 = vector.load %arg7[%c22, %c0_70] : memref<40x128xf32, #tpu.memory_space<vmem>>, vector<8x16xf32>
    %c304 = arith.constant 304 : index
    %c0_71 = arith.constant 0 : index
    %95 = vector.load %arg4[%c304, %c0_71] : memref<400x128xf32, #tpu.memory_space<vmem>>, vector<16x128xf32>
    %cst_72 = arith.constant dense<0.000000e+00> : vector<8x128xf32>
    %96 = tpu.matmul %94, %95, %cst_72 {dimension_numbers = #tpu.dot_dimension_numbers<[1], [0], [0], [1], [0, 0, 1, 1], [], []>} : vector<8x16xf32>, vector<16x128xf32>, vector<8x128xf32> -> vector<8x128xf32>
    %97 = arith.addf %93, %96 : vector<8x128xf32>
    %c24 = arith.constant 24 : index
    %c0_73 = arith.constant 0 : index
    %98 = vector.load %arg7[%c24, %c0_73] : memref<40x128xf32, #tpu.memory_space<vmem>>, vector<8x16xf32>
    %c320 = arith.constant 320 : index
    %c0_74 = arith.constant 0 : index
    %99 = vector.load %arg4[%c320, %c0_74] : memref<400x128xf32, #tpu.memory_space<vmem>>, vector<16x128xf32>
    %cst_75 = arith.constant dense<0.000000e+00> : vector<8x128xf32>
    %100 = tpu.matmul %98, %99, %cst_75 {dimension_numbers = #tpu.dot_dimension_numbers<[1], [0], [0], [1], [0, 0, 1, 1], [], []>} : vector<8x16xf32>, vector<16x128xf32>, vector<8x128xf32> -> vector<8x128xf32>
    %101 = arith.addf %97, %100 : vector<8x128xf32>
    %c25 = arith.constant 25 : index
    %c0_76 = arith.constant 0 : index
    %102 = vector.load %arg7[%c25, %c0_76] : memref<40x128xf32, #tpu.memory_space<vmem>>, vector<8x16xf32>
    %c336 = arith.constant 336 : index
    %c0_77 = arith.constant 0 : index
    %103 = vector.load %arg4[%c336, %c0_77] : memref<400x128xf32, #tpu.memory_space<vmem>>, vector<16x128xf32>
    %cst_78 = arith.constant dense<0.000000e+00> : vector<8x128xf32>
    %104 = tpu.matmul %102, %103, %cst_78 {dimension_numbers = #tpu.dot_dimension_numbers<[1], [0], [0], [1], [0, 0, 1, 1], [], []>} : vector<8x16xf32>, vector<16x128xf32>, vector<8x128xf32> -> vector<8x128xf32>
    %105 = arith.addf %101, %104 : vector<8x128xf32>
    %c26 = arith.constant 26 : index
    %c0_79 = arith.constant 0 : index
    %106 = vector.load %arg7[%c26, %c0_79] : memref<40x128xf32, #tpu.memory_space<vmem>>, vector<8x16xf32>
    %c352 = arith.constant 352 : index
    %c0_80 = arith.constant 0 : index
    %107 = vector.load %arg4[%c352, %c0_80] : memref<400x128xf32, #tpu.memory_space<vmem>>, vector<16x128xf32>
    %cst_81 = arith.constant dense<0.000000e+00> : vector<8x128xf32>
    %108 = tpu.matmul %106, %107, %cst_81 {dimension_numbers = #tpu.dot_dimension_numbers<[1], [0], [0], [1], [0, 0, 1, 1], [], []>} : vector<8x16xf32>, vector<16x128xf32>, vector<8x128xf32> -> vector<8x128xf32>
    %109 = arith.addf %105, %108 : vector<8x128xf32>
    %c27 = arith.constant 27 : index
    %c0_82 = arith.constant 0 : index
    %110 = vector.load %arg7[%c27, %c0_82] : memref<40x128xf32, #tpu.memory_space<vmem>>, vector<8x16xf32>
    %c368 = arith.constant 368 : index
    %c0_83 = arith.constant 0 : index
    %111 = vector.load %arg4[%c368, %c0_83] : memref<400x128xf32, #tpu.memory_space<vmem>>, vector<16x128xf32>
    %cst_84 = arith.constant dense<0.000000e+00> : vector<8x128xf32>
    %112 = tpu.matmul %110, %111, %cst_84 {dimension_numbers = #tpu.dot_dimension_numbers<[1], [0], [0], [1], [0, 0, 1, 1], [], []>} : vector<8x16xf32>, vector<16x128xf32>, vector<8x128xf32> -> vector<8x128xf32>
    %113 = arith.addf %109, %112 : vector<8x128xf32>
    %c28 = arith.constant 28 : index
    %c0_85 = arith.constant 0 : index
    %114 = vector.load %arg7[%c28, %c0_85] : memref<40x128xf32, #tpu.memory_space<vmem>>, vector<8x16xf32>
    %c384 = arith.constant 384 : index
    %c0_86 = arith.constant 0 : index
    %115 = vector.load %arg4[%c384, %c0_86] : memref<400x128xf32, #tpu.memory_space<vmem>>, vector<16x128xf32>
    %cst_87 = arith.constant dense<0.000000e+00> : vector<8x128xf32>
    %116 = tpu.matmul %114, %115, %cst_87 {dimension_numbers = #tpu.dot_dimension_numbers<[1], [0], [0], [1], [0, 0, 1, 1], [], []>} : vector<8x16xf32>, vector<16x128xf32>, vector<8x128xf32> -> vector<8x128xf32>
    %117 = arith.addf %113, %116 : vector<8x128xf32>
    %118 = vector.extract_strided_slice %117 {offsets = [0, 0], sizes = [2, 128], strides = [1, 1]} : vector<8x128xf32> to vector<2x128xf32>
    %119 = vector.extract_strided_slice %117 {offsets = [6, 0], sizes = [2, 128], strides = [1, 1]} : vector<8x128xf32> to vector<2x128xf32>
    %120 = tpu.concatenate %118, %119 in 0 : vector<2x128xf32>, vector<2x128xf32> -> vector<4x128xf32>
    %c0_88 = arith.constant 0 : index
    %c0_89 = arith.constant 0 : index
    %121 = vector.load %arg5[%c0_88, %c0_89] : memref<1x128xf32, #tpu.memory_space<vmem>>, vector<1x128xf32>
    %122 = vector.broadcast %121 : vector<1x128xf32> to vector<4x128xf32>
    %123 = arith.addf %120, %122 : vector<4x128xf32>
    %c0_90 = arith.constant 0 : index
    %c0_91 = arith.constant 0 : index
    %c0_92 = arith.constant 0 : index
    %124 = vector.load %arg6[%c0_90, %c0_91, %c0_92] : memref<1x4x128xf32, #tpu.memory_space<vmem>>, vector<1x4x128xf32>
    %125 = vector.shape_cast %124 : vector<1x4x128xf32> to vector<4x128xf32>
    %126 = vector.shape_cast %123 : vector<4x128xf32> to vector<1x4x128xf32>
    tpu.vector_store %arg6[%c0_90, %c0_91, %c0_92], %126 {strides = array<i32>} : memref<1x4x128xf32, #tpu.memory_space<vmem>>, vector<1x4x128xf32>,
    return
  }
  func.func @transform_0(%arg0: i32) -> (i32, i32, i32) {
    %c0_i32 = arith.constant 0 : i32
    %c0_i32_0 = arith.constant 0 : i32
    %c0_i32_1 = arith.constant 0 : i32
    return %arg0, %c0_i32, %c0_i32_0 : i32, i32, i32
  }
  func.func @transform_1(%arg0: i32) -> (i32, i32) {
    %c0_i32 = arith.constant 0 : i32
    %c0_i32_0 = arith.constant 0 : i32
    %c0_i32_1 = arith.constant 0 : i32
    return %c0_i32, %c0_i32_0 : i32, i32
  }
  func.func @transform_2(%arg0: i32) -> (i32, i32) {
    %c0_i32 = arith.constant 0 : i32
    %c0_i32_0 = arith.constant 0 : i32
    %c0_i32_1 = arith.constant 0 : i32
    return %c0_i32, %c0_i32_0 : i32, i32
  }
  func.func @transform_3(%arg0: i32) -> (i32, i32) {
    %c0_i32 = arith.constant 0 : i32
    %c0_i32_0 = arith.constant 0 : i32
    %c0_i32_1 = arith.constant 0 : i32
    return %c0_i32, %c0_i32_0 : i32, i32
  }
  func.func @transform_4(%arg0: i32) -> (i32, i32) {
    %c0_i32 = arith.constant 0 : i32
    %c0_i32_0 = arith.constant 0 : i32
    %c0_i32_1 = arith.constant 0 : i32
    return %c0_i32, %c0_i32_0 : i32, i32
  }
  func.func @transform_5(%arg0: i32) -> (i32, i32, i32) {
    %c0_i32 = arith.constant 0 : i32
    %c0_i32_0 = arith.constant 0 : i32
    %c0_i32_1 = arith.constant 0 : i32
    return %arg0, %c0_i32, %c0_i32_0 : i32, i32, i32
  }
}

</mosaic_0001>

<llo_original>
// kernel: forward.1
$region0: #{forward.1}
  #allocation0 [shape = 'u32[]', space=smem, size = 0x4, offset = 0x4, fixed_abs, tag = 'smem constant byte address 0x4 - core index']
  #allocation1 [shape = 'u32[144,128]{1,0:T(1,128)}', space=vmem, size = 0x12000, scoped, tag = 'internal scratch']
  #allocation2 [shape = 'f32[40,128]{1,0:T(8,128)}', space=vmem, size = 0x5000, scoped, tag = 'scratch operand']
  %s0 = inlined_call_operand.vmem [shape: f32[2,160,128], index: 0, kind: input, shape index: {}]
  %s1 = inlined_call_operand.vmem [shape: f32[128,128], index: 1, kind: input, shape index: {}]
  %s2 = inlined_call_operand.vmem [shape: f32[1,128], index: 2, kind: input, shape index: {}]
  %s3 = inlined_call_operand.vmem [shape: f32[400,128], index: 3, kind: input, shape index: {}]
  %s4 = inlined_call_operand.vmem [shape: f32[1,128], index: 4, kind: input, shape index: {}]
  %s5 = inlined_call_operand.hbm [shape: f32[2,4,128], index: 5, kind: output, shape index: {}]
  %s6 = sld [smem:[#allocation0]]
  $region53: #{forward.1} parent=0
    _
  %s8 = ssub.s32 1, %s6
  %s9 = scalar_select 0, %s8, %s6
  $region1: #{forward.1} parent=0
    #allocation3 [shape = 'u8[4096]{0}', space=vmem, size = 0x1000, scoped, tag = 'output window, operand 0']
    #allocation4 [shape = 's32[2]{0}', space=sflag, size = 0x8, scoped, tag = 'scoped memory for forward.1']
    %10 = vsyncpa [#allocation4], 0
    %s11 = scalar_lea.sflag [#allocation4], 1
    %12 = vsyncpa %s11, 0
    loop: start=0, step=1, limit=4
    $region2: #{forward.1} parent=1 // loop_pre_header
      _
    $region3: #{forward.1} parent=1 // loop_header
      %s14 = sphi 0, %s18
      %p15 = scmp.ge.s32.totalorder %s14, 4
      %s24 = sphi 0, %s26
      %s27 = sphi 0, %s24
      %s28 = sphi 0, %s27
      %s44 = sphi 0, %s28
      %s48 = sphi 0, %s48
      %s50 = sphi 0, %s48
      %s51 = sphi 0, %s50
      %s65 = sphi 0, %s51
      %s69 = sphi 0, %s69
      %s71 = sphi 0, %s69
      %s72 = sphi 0, %s71
      %s86 = sphi 0, %s72
      %s90 = sphi 0, %s90
      %s92 = sphi 0, %s90
      %s93 = sphi 0, %s92
      %s107 = sphi 0, %s93
      %s111 = sphi 0, %s111
      %s113 = sphi 0, %s111
      %s114 = sphi 0, %s113
      %s128 = sphi 0, %s114
      %s134 = sphi 0, %s136
      %s137 = sphi 0, %s134
      %s138 = sphi 0, %s137
      %s154 = sphi 0, %s138
    $region4: #{forward.1} parent=1 // loop_header_branch
      %17 = sbr.rel (%p15) target = $region8
    $region5: #{forward.1} parent=1 // loop_body
      %s19 = ssub.s32 %s14, 1
      %s20 = ssub.s32 %s14, 2
      %s21 = sadd.s32 %s14, 1
      %s22 = ssub.s32 %s14, %s21
      %p23 = scmp.eq.s32.totalorder %s22, 0
      %s25 = sadd.s32 %s24, 1
      %s26 = scalar_select %p23, %s24, %s25
      %p29 = pneg %p23
      %p30 = scmp.eq.s32.totalorder %s14, 1
      %p31 = por %p29, %p30
      %p32 = scmp.ne.s32.totalorder %s24, %s27
      %p33 = scmp.eq.s32.totalorder %s14, 0
      %p34 = por %p32, %p33
      %p35 = scmp.ne.s32.totalorder %s24, %s27
      %p36 = scmp.eq.s32.totalorder %s19, 1
      %p37 = por %p35, %p36
      %p38 = scmp.ne.s32.totalorder %s27, %s28
      %p39 = scmp.eq.s32.totalorder %s19, 0
      %p40 = por %p38, %p39
      %p41 = scmp.ne.s32.totalorder %s27, %s28
      %p42 = scmp.eq.s32.totalorder %s20, 1
      %p43 = por %p41, %p42
      %p45 = scmp.ne.s32.totalorder %s28, %s44
      %p46 = scmp.eq.s32.totalorder %s20, 0
      %p47 = por %p45, %p46
      %s49 = sadd.s32 %s48, 1
      %p52 = scmp.eq.s32.totalorder %s14, 1
      %p53 = scmp.ne.s32.totalorder %s48, %s50
      %p54 = scmp.eq.s32.totalorder %s14, 0
      %p55 = por %p53, %p54
      %p56 = scmp.ne.s32.totalorder %s48, %s50
      %p57 = scmp.eq.s32.totalorder %s19, 1
      %p58 = por %p56, %p57
      %p59 = scmp.ne.s32.totalorder %s50, %s51
      %p60 = scmp.eq.s32.totalorder %s19, 0
      %p61 = por %p59, %p60
      %p62 = scmp.ne.s32.totalorder %s50, %s51
      %p63 = scmp.eq.s32.totalorder %s20, 1
      %p64 = por %p62, %p63
      %p66 = scmp.ne.s32.totalorder %s51, %s65
      %p67 = scmp.eq.s32.totalorder %s20, 0
      %p68 = por %p66, %p67
      %s70 = sadd.s32 %s69, 1
      %p73 = scmp.eq.s32.totalorder %s14, 1
      %p74 = scmp.ne.s32.totalorder %s69, %s71
      %p75 = scmp.eq.s32.totalorder %s14, 0
      %p76 = por %p74, %p75
      %p77 = scmp.ne.s32.totalorder %s69, %s71
      %p78 = scmp.eq.s32.totalorder %s19, 1
      %p79 = por %p77, %p78
      %p80 = scmp.ne.s32.totalorder %s71, %s72
      %p81 = scmp.eq.s32.totalorder %s19, 0
      %p82 = por %p80, %p81
      %p83 = scmp.ne.s32.totalorder %s71, %s72
      %p84 = scmp.eq.s32.totalorder %s20, 1
      %p85 = por %p83, %p84
      %p87 = scmp.ne.s32.totalorder %s72, %s86
      %p88 = scmp.eq.s32.totalorder %s20, 0
      %p89 = por %p87, %p88
      %s91 = sadd.s32 %s90, 1
      %p94 = scmp.eq.s32.totalorder %s14, 1
      %p95 = scmp.ne.s32.totalorder %s90, %s92
      %p96 = scmp.eq.s32.totalorder %s14, 0
      %p97 = por %p95, %p96
      %p98 = scmp.ne.s32.totalorder %s90, %s92
      %p99 = scmp.eq.s32.totalorder %s19, 1
      %p100 = por %p98, %p99
      %p101 = scmp.ne.s32.totalorder %s92, %s93
      %p102 = scmp.eq.s32.totalorder %s19, 0
      %p103 = por %p101, %p102
      %p104 = scmp.ne.s32.totalorder %s92, %s93
      %p105 = scmp.eq.s32.totalorder %s20, 1
      %p106 = por %p104, %p105
      %p108 = scmp.ne.s32.totalorder %s93, %s107
      %p109 = scmp.eq.s32.totalorder %s20, 0
      %p110 = por %p108, %p109
      %s112 = sadd.s32 %s111, 1
      %p115 = scmp.eq.s32.totalorder %s14, 1
      %p116 = scmp.ne.s32.totalorder %s111, %s113
      %p117 = scmp.eq.s32.totalorder %s14, 0
      %p118 = por %p116, %p117
      %p119 = scmp.ne.s32.totalorder %s111, %s113
      %p120 = scmp.eq.s32.totalorder %s19, 1
      %p121 = por %p119, %p120
      %p122 = scmp.ne.s32.totalorder %s113, %s114
      %p123 = scmp.eq.s32.totalorder %s19, 0
      %p124 = por %p122, %p123
      %p125 = scmp.ne.s32.totalorder %s113, %s114
      %p126 = scmp.eq.s32.totalorder %s20, 1
      %p127 = por %p125, %p126
      %p129 = scmp.ne.s32.totalorder %s114, %s128
      %p130 = scmp.eq.s32.totalorder %s20, 0
      %p131 = por %p129, %p130
      %s132 = ssub.s32 %s14, %s21
      %p133 = scmp.eq.s32.totalorder %s132, 0
      %s135 = sadd.s32 %s134, 1
      %s136 = scalar_select %p133, %s134, %s135
      %p139 = pneg %p133
      %p140 = scmp.eq.s32.totalorder %s14, 1
      %p141 = por %p139, %p140
      %p142 = scmp.ne.s32.totalorder %s134, %s137
      %p143 = scmp.eq.s32.totalorder %s14, 0
      %p144 = por %p142, %p143
      %p145 = scmp.ne.s32.totalorder %s134, %s137
      %p146 = scmp.eq.s32.totalorder %s19, 1
      %p147 = por %p145, %p146
      %p148 = scmp.ne.s32.totalorder %s137, %s138
      %p149 = scmp.eq.s32.totalorder %s19, 0
      %p150 = por %p148, %p149
      %p151 = scmp.ne.s32.totalorder %s137, %s138
      %p152 = scmp.eq.s32.totalorder %s20, 1
      %p153 = por %p151, %p152
      %p155 = scmp.ne.s32.totalorder %s138, %s154
      %p156 = scmp.eq.s32.totalorder %s20, 0
      %p157 = por %p155, %p156
      %p158 = scmp.le.s32.totalorder 1, %s14
      %p159 = scmp.lt.s32.totalorder %s14, 3
      %p160 = pnand %p158, %p159
      %p161 = pneg %p160
      // Predicated region
      $region9: #{forward.1} parent=5 // pred_check
        _
      $region10: #{forward.1} parent=5 // pred_check_branch
        %163 = sbr.rel (%p160) target = $region12
      $region11: #{forward.1} parent=5 // pred_region
        %s164 = ssub.s32 %s14, 1
        // Predicated region
        $region13: #{forward.1} parent=11 // pred_check
          %p165 = pneg %p61
        $region14: #{forward.1} parent=11 // pred_check_branch
          %167 = sbr.rel (%p165) target = $region16
        $region15: #{forward.1} parent=11 // pred_region
          _
        $region16: #{forward.1} parent=11 // pred_fallthru
          _
        // Predicated region
        $region17: #{forward.1} parent=11 // pred_check
          %p168 = pneg %p82
        $region18: #{forward.1} parent=11 // pred_check_branch
          %170 = sbr.rel (%p168) target = $region20
        $region19: #{forward.1} parent=11 // pred_region
          _
        $region20: #{forward.1} parent=11 // pred_fallthru
          _
        // Predicated region
        $region21: #{forward.1} parent=11 // pred_check
          %p171 = pneg %p103
        $region22: #{forward.1} parent=11 // pred_check_branch
          %173 = sbr.rel (%p171) target = $region24
        $region23: #{forward.1} parent=11 // pred_region
          _
        $region24: #{forward.1} parent=11 // pred_fallthru
          _
        // Predicated region
        $region25: #{forward.1} parent=11 // pred_check
          %p174 = pneg %p124
        $region26: #{forward.1} parent=11 // pred_check_branch
          %176 = sbr.rel (%p174) target = $region28
        $region27: #{forward.1} parent=11 // pred_region
          _
        $region28: #{forward.1} parent=11 // pred_fallthru
          _
      $region12: #{forward.1} parent=5 // pred_fallthru
        _
      %p177 = scmp.lt.s32.totalorder %s14, 2
      // Predicated region
      $region29: #{forward.1} parent=5 // pred_check
        %p178 = pneg %p177
      $region30: #{forward.1} parent=5 // pred_check_branch
        %180 = sbr.rel (%p178) target = $region32
      $region31: #{forward.1} parent=5 // pred_region
        // Predicated region
        $region33: #{forward.1} parent=31 // pred_check
          %p181 = pneg %p34
        $region34: #{forward.1} parent=31 // pred_check_branch
          %183 = sbr.rel (%p181) target = $region36
        $region35: #{forward.1} parent=31 // pred_region
          %p184 = scmp.lt.s32.totalorder %s14, 1
          %s185 = scalar_select %p184, %s14, 1
          %s186 = smul.addr %s185, 20
          %s187 = smul.addr %s186, 8
          %s188 = scalar_lea.vmem %s0, %s187
        $region36: #{forward.1} parent=31 // pred_fallthru
          _
      $region32: #{forward.1} parent=5 // pred_fallthru
        _
      %p189 = scmp.le.s32.totalorder 1, %s14
      %p190 = scmp.lt.s32.totalorder %s14, 3
      %p191 = pnand %p189, %p190
      %p192 = pneg %p191
      // Predicated region
      $region37: #{forward.1} parent=5 // pred_check
        _
      $region38: #{forward.1} parent=5 // pred_check_branch
        %194 = sbr.rel (%p191) target = $region40
      $region39: #{forward.1} parent=5 // pred_region
        %s195 = ssub.s32 %s14, 1
        %p196 = scmp.lt.s32.totalorder %s19, 1
        %s197 = scalar_select %p196, %s19, 1
        %s198 = smul.addr %s197, 20
        %s199 = smul.addr %s198, 8
        %s200 = scalar_lea.vmem %s0, %s199
        %p201 = pneg %p40
        %p202 = pneg %p37
        %p203 = pneg %p61
        %p204 = pneg %p58
        %p205 = pneg %p82
        %p206 = pneg %p79
        %p207 = pneg %p103
        %p208 = pneg %p100
        %p209 = pneg %p124
        %p210 = pneg %p121
        %p211 = pneg %p150
        %p212 = pneg %p147
        %s213 = sand.u32 %s137, 1
        %s214 = scalar_lea.sflag [#allocation4], %s213
        %s215 = sand.u32 %s137, 1
        %s216 = smul.addr %s215, 4
        %s217 = scalar_lea.vmem [#allocation3], %s216
        %p218 = scmp.lt.s32.totalorder %s19, 1
        %s219 = scalar_select %p218, %s19, 1
        %s220 = smul.addr %s219, 20
        %s221 = smul.addr %s220, 8
        %s222 = scalar_lea.vmem %s0, %s221
        %v223 = vld [vmem:[%s222] sm:$0xff]
        %v224 = vld [vmem:[%s222 + $0x8] sm:$0xff]
        %v225 = vld [vmem:[%s222 + $0x10] sm:$0xff]
        %v226 = vld [vmem:[%s222 + $0x18] sm:$0xff]
        %v227 = vld [vmem:[%s222 + $0x20] sm:$0xff]
        %v228 = vld [vmem:[%s222 + $0x28] sm:$0xff]
        %v229 = vld [vmem:[%s222 + $0x30] sm:$0xff]
        %v230 = vld [vmem:[%s222 + $0x38] sm:$0xff]
        %v231 = vld [vmem:[%s222 + $0x40] sm:$0xff]
        %v232 = vld [vmem:[%s222 + $0x48] sm:$0xff]
        %v233 = vld [vmem:[%s222 + $0x50] sm:$0xff]
        %v234 = vld [vmem:[%s222 + $0x58] sm:$0xff]
        %v235 = vld [vmem:[%s222 + $0x60] sm:$0xff]
        %v236 = vld [vmem:[%s222 + $0x68] sm:$0xff]
        %v237 = vld [vmem:[%s222 + $0x70] sm:$0xff]
        %v238 = vld [vmem:[%s222 + $0x78] sm:$0xff]
        %v239 = vld [vmem:[%s222 + $0x80] sm:$0xff]
        %v240 = vld [vmem:[%s222 + $0x88] sm:$0xff]
        %v241 = vld [vmem:[%s222 + $0x90] sm:$0xff]
        %v242 = vld [vmem:[%s222 + $0x98] sm:$0xff]
        %v243 = vld [vmem:[%s1] sm:$0xff]
        %v244 = vld [vmem:[%s1 + $0x8] sm:$0xff]
        %v245 = vld [vmem:[%s1 + $0x10] sm:$0xff]
        %v246 = vld [vmem:[%s1 + $0x18] sm:$0xff]
        %v247 = vld [vmem:[%s1 + $0x20] sm:$0xff]
        %v248 = vld [vmem:[%s1 + $0x28] sm:$0xff]
        %v249 = vld [vmem:[%s1 + $0x30] sm:$0xff]
        %v250 = vld [vmem:[%s1 + $0x38] sm:$0xff]
        %v251 = vld [vmem:[%s1 + $0x40] sm:$0xff]
        %v252 = vld [vmem:[%s1 + $0x48] sm:$0xff]
        %v253 = vld [vmem:[%s1 + $0x50] sm:$0xff]
        %v254 = vld [vmem:[%s1 + $0x58] sm:$0xff]
        %v255 = vld [vmem:[%s1 + $0x60] sm:$0xff]
        %v256 = vld [vmem:[%s1 + $0x68] sm:$0xff]
        %v257 = vld [vmem:[%s1 + $0x70] sm:$0xff]
        %v258 = vld [vmem:[%s1 + $0x78] sm:$0xff]
        %259 = vmatprep.subr.mxu0 0.0
        %260 = vmatpush1.msra.mxu0 %v243
        %261 = vmatprep.subr.mxu0 0.0
        %262 = vmatpush1.msra.mxu0 %v244
        %263 = vmatprep.subr.mxu0 0.0
        %264 = vmatpush1.msra.mxu0 %v245
        %265 = vmatprep.subr.mxu0 0.0
        %266 = vmatpush1.msra.mxu0 %v246
        %267 = vmatprep.subr.mxu0 0.0
        %268 = vmatpush1.msra.mxu0 %v247
        %269 = vmatprep.subr.mxu0 0.0
        %270 = vmatpush1.msra.mxu0 %v248
        %271 = vmatprep.subr.mxu0 0.0
        %272 = vmatpush1.msra.mxu0 %v249
        %273 = vmatprep.subr.mxu0 0.0
        %274 = vmatpush1.msra.mxu0 %v250
        %275 = vmatprep.subr.mxu0 0.0
        %276 = vmatpush1.msra.mxu0 %v251
        %277 = vmatprep.subr.mxu0 0.0
        %278 = vmatpush1.msra.mxu0 %v252
        %279 = vmatprep.subr.mxu0 0.0
        %280 = vmatpush1.msra.mxu0 %v253
        %281 = vmatprep.subr.mxu0 0.0
        %282 = vmatpush1.msra.mxu0 %v254
        %283 = vmatprep.subr.mxu0 0.0
        %284 = vmatpush1.msra.mxu0 %v255
        %285 = vmatprep.subr.mxu0 0.0
        %286 = vmatpush1.msra.mxu0 %v256
        %287 = vmatprep.subr.mxu0 0.0
        %288 = vmatpush1.msra.mxu0 %v257
        %289 = vmatprep.subr.mxu0 0.0
        %290 = vmatpush1.msra.mxu0 %v258
        %291 = vmatprep.subr.mxu0 0.0
        %292 = vmatpush1.msra.mxu0 0.0
        %293 = vmatprep.subr.mxu0 0.0
        %294 = vmatpush1.msra.mxu0 0.0
        %295 = vmatprep.subr.mxu0 0.0
        %296 = vmatpush1.msra.mxu0 0.0
        %297 = vmatprep.subr.mxu0 0.0
        %298 = vmatpush1.msra.mxu0 0.0
        %299 = vmatprep.subr.mxu0 0.0
        %300 = vmatpush1.msra.mxu0 0.0
        %301 = vmatprep.subr.mxu0 0.0
        %302 = vmatpush1.msra.mxu0 0.0
        %303 = vmatprep.subr.mxu0 0.0
        %304 = vmatpush1.msra.mxu0 0.0
        %305 = vmatprep.subr.mxu0 0.0
        %306 = vmatpush1.msra.mxu0 0.0
        %307 = vmatprep.subr.mxu0 0.0
        %308 = vmatpush1.msra.mxu0 0.0
        %309 = vmatprep.subr.mxu0 0.0
        %310 = vmatpush1.msra.mxu0 0.0
        %311 = vmatprep.subr.mxu0 0.0
        %312 = vmatpush1.msra.mxu0 0.0
        %313 = vmatprep.subr.mxu0 0.0
        %314 = vmatpush1.msra.mxu0 0.0
        %315 = vmatprep.subr.mxu0 0.0
        %316 = vmatpush1.msra.mxu0 0.0
        %317 = vmatprep.subr.mxu0 0.0
        %318 = vmatpush1.msra.mxu0 0.0
        %319 = vmatprep.subr.mxu0 0.0
        %320 = vmatpush1.msra.mxu0 0.0
        %321 = vmatprep.subr.mxu0 0.0
        %322 = vmatpush1.msra.mxu0 0.0
        %323 = vmatprep.mubr.f32.mxu0 0.0
        %324 = vmatmul.mubr.f32.gmra.mrb[0].mxu0 %v223
        %v325 = vpop.f32.mrb[0].mxu0
        %v326 = vadd.f32 0.0, %v325
        %v327 = vpop.f32.mrb[0].mxu0
        %328 = vmatprep.mubr.f32.mxu0 0.0
        %329 = vmatmul.mubr.f32.gmra.mrb[0].mxu0 %v224
        %v330 = vpop.f32.mrb[0].mxu0
        %v331 = vadd.f32 0.0, %v330
        %v332 = vpop.f32.mrb[0].mxu0
        %333 = vmatprep.mubr.f32.mxu0 0.0
        %334 = vmatmul.mubr.f32.gmra.mrb[0].mxu0 %v225
        %v335 = vpop.f32.mrb[0].mxu0
        %v336 = vadd.f32 0.0, %v335
        %v337 = vpop.f32.mrb[0].mxu0
        %338 = vmatprep.mubr.f32.mxu0 0.0
        %339 = vmatmul.mubr.f32.gmra.mrb[0].mxu0 %v226
        %v340 = vpop.f32.mrb[0].mxu0
        %v341 = vadd.f32 0.0, %v340
        %v342 = vpop.f32.mrb[0].mxu0
        %343 = vmatprep.mubr.f32.mxu0 0.0
        %344 = vmatmul.mubr.f32.gmra.mrb[0].mxu0 %v227
        %v345 = vpop.f32.mrb[0].mxu0
        %v346 = vadd.f32 0.0, %v345
        %v347 = vpop.f32.mrb[0].mxu0
        %348 = vmatprep.mubr.f32.mxu0 0.0
        %349 = vmatmul.mubr.f32.gmra.mrb[0].mxu0 %v228
        %v350 = vpop.f32.mrb[0].mxu0
        %v351 = vadd.f32 0.0, %v350
        %v352 = vpop.f32.mrb[0].mxu0
        %353 = vmatprep.mubr.f32.mxu0 0.0
        %354 = vmatmul.mubr.f32.gmra.mrb[0].mxu0 %v229
        %v355 = vpop.f32.mrb[0].mxu0
        %v356 = vadd.f32 0.0, %v355
        %v357 = vpop.f32.mrb[0].mxu0
        %358 = vmatprep.mubr.f32.mxu0 0.0
        %359 = vmatmul.mubr.f32.gmra.mrb[0].mxu0 %v230
        %v360 = vpop.f32.mrb[0].mxu0
        %v361 = vadd.f32 0.0, %v360
        %v362 = vpop.f32.mrb[0].mxu0
        %363 = vmatprep.mubr.f32.mxu0 0.0
        %364 = vmatmul.mubr.f32.gmra.mrb[0].mxu0 %v231
        %v365 = vpop.f32.mrb[0].mxu0
        %v366 = vadd.f32 0.0, %v365
        %v367 = vpop.f32.mrb[0].mxu0
        %368 = vmatprep.mubr.f32.mxu0 0.0
        %369 = vmatmul.mubr.f32.gmra.mrb[0].mxu0 %v232
        %v370 = vpop.f32.mrb[0].mxu0
        %v371 = vadd.f32 0.0, %v370
        %v372 = vpop.f32.mrb[0].mxu0
        %373 = vmatprep.mubr.f32.mxu0 0.0
        %374 = vmatmul.mubr.f32.gmra.mrb[0].mxu0 %v233
        %v375 = vpop.f32.mrb[0].mxu0
        %v376 = vadd.f32 0.0, %v375
        %v377 = vpop.f32.mrb[0].mxu0
        %378 = vmatprep.mubr.f32.mxu0 0.0
        %379 = vmatmul.mubr.f32.gmra.mrb[0].mxu0 %v234
        %v380 = vpop.f32.mrb[0].mxu0
        %v381 = vadd.f32 0.0, %v380
        %v382 = vpop.f32.mrb[0].mxu0
        %383 = vmatprep.mubr.f32.mxu0 0.0
        %384 = vmatmul.mubr.f32.gmra.mrb[0].mxu0 %v235
        %v385 = vpop.f32.mrb[0].mxu0
        %v386 = vadd.f32 0.0, %v385
        %v387 = vpop.f32.mrb[0].mxu0
        %388 = vmatprep.mubr.f32.mxu0 0.0
        %389 = vmatmul.mubr.f32.gmra.mrb[0].mxu0 %v236
        %v390 = vpop.f32.mrb[0].mxu0
        %v391 = vadd.f32 0.0, %v390
        %v392 = vpop.f32.mrb[0].mxu0
        %393 = vmatprep.mubr.f32.mxu0 0.0
        %394 = vmatmul.mubr.f32.gmra.mrb[0].mxu0 %v237
        %v395 = vpop.f32.mrb[0].mxu0
        %v396 = vadd.f32 0.0, %v395
        %v397 = vpop.f32.mrb[0].mxu0
        %398 = vmatprep.mubr.f32.mxu0 0.0
        %399 = vmatmul.mubr.f32.gmra.mrb[0].mxu0 %v238
        %v400 = vpop.f32.mrb[0].mxu0
        %v401 = vadd.f32 0.0, %v400
        %v402 = vpop.f32.mrb[0].mxu0
        %403 = vmatprep.mubr.f32.mxu0 0.0
        %404 = vmatmul.mubr.f32.gmra.mrb[0].mxu0 %v239
        %v405 = vpop.f32.mrb[0].mxu0
        %v406 = vadd.f32 0.0, %v405
        %v407 = vpop.f32.mrb[0].mxu0
        %408 = vmatprep.mubr.f32.mxu0 0.0
        %409 = vmatmul.mubr.f32.gmra.mrb[0].mxu0 %v240
        %v410 = vpop.f32.mrb[0].mxu0
        %v411 = vadd.f32 0.0, %v410
        %v412 = vpop.f32.mrb[0].mxu0
        %413 = vmatprep.mubr.f32.mxu0 0.0
        %414 = vmatmul.mubr.f32.gmra.mrb[0].mxu0 %v241
        %v415 = vpop.f32.mrb[0].mxu0
        %v416 = vadd.f32 0.0, %v415
        %v417 = vpop.f32.mrb[0].mxu0
        %418 = vmatprep.mubr.f32.mxu0 0.0
        %419 = vmatmul.mubr.f32.gmra.mrb[0].mxu0 %v242
        %v420 = vpop.f32.mrb[0].mxu0
        %v421 = vadd.f32 0.0, %v420
        %v422 = vpop.f32.mrb[0].mxu0
        %423 = vdwg.mxu0
        %v424 = vmax.f32 %v326, %v351
        %v425 = vmax.f32 %v331, %v356
        %v426 = vmax.f32 %v336, %v361
        %v427 = vmax.f32 %v341, %v366
        %v428 = vmax.f32 %v346, %v371
        %v429 = vmax.f32 %v376, %v401
        %v430 = vmax.f32 %v381, %v406
        %v431 = vmax.f32 %v386, %v411
        %v432 = vmax.f32 %v391, %v416
        %v433 = vmax.f32 %v396, %v421
        %v434 = vmax.f32 %v424, %v429
        %v435 = vmax.f32 %v425, %v430
        %v436 = vmax.f32 %v426, %v431
        %v437 = vmax.f32 %v427, %v432
        %v438 = vmax.f32 %v428, %v433
        %v439 = vld [vmem:[%s2] sm:$0x1]
        %v441 = vlaneseq
        %v442 = vshrl.u32 %v441, 7
        %v443 = vsub.s32 0, %v442
        %v444 = vrot.slane %v439, %v443
        %v446 = vadd.f32 %v434, %v444
        %v447 = vadd.f32 %v435, %v444
        %v448 = vadd.f32 %v436, %v444
        %v449 = vadd.f32 %v437, %v444
        %v450 = vadd.f32 %v438, %v444
        %v451 = vmax.f32 %v446, 0.0
        %v452 = vmax.f32 %v447, 0.0
        %v453 = vmax.f32 %v448, 0.0
        %v454 = vmax.f32 %v449, 0.0
        %v455 = vmax.f32 %v450, 0.0
        %456 = vst [vmem:[#allocation2] sm:$0xff] %v451
        %457 = vst [vmem:[#allocation2 + $0x8] sm:$0xff] %v452
        %458 = vst [vmem:[#allocation2 + $0x10] sm:$0xff] %v453
        %459 = vst [vmem:[#allocation2 + $0x18] sm:$0xff] %v454
        %460 = vst [vmem:[#allocation2 + $0x20] sm:$0xff] %v455
        %v461 = vld [vmem:[#allocation2] sm:$0xff]
        %v462 = vld [vmem:[%s3] sm:$0xff]
        %v463 = vld [vmem:[%s3 + $0x8] sm:$0xff]
        %v464 = vld [vmem:[#allocation2 + $0x1] sm:$0xff]
        %v465 = vld [vmem:[%s3 + $0x10] sm:$0xff]
        %v466 = vld [vmem:[%s3 + $0x18] sm:$0xff]
        %vm467 = vcmask 130048
        %v469 = vsel %vm467, %v464, 0
        %471 = vmatprep.subr.mxu0 0.0
        %472 = vmatpush1.msra.mxu0 %v465
        %473 = vmatprep.subr.mxu0 0.0
        %474 = vmatpush1.msra.mxu0 %v466
        %475 = vmatprep.subr.mxu0 0.0
        %476 = vmatpush1.msra.mxu0 0.0
        %477 = vmatprep.subr.mxu0 0.0
        %478 = vmatpush1.msra.mxu0 0.0
        %479 = vmatprep.subr.mxu0 0.0
        %480 = vmatpush1.msra.mxu0 0.0
        %481 = vmatprep.subr.mxu0 0.0
        %482 = vmatpush1.msra.mxu0 0.0
        %483 = vmatprep.subr.mxu0 0.0
        %484 = vmatpush1.msra.mxu0 0.0
        %485 = vmatprep.subr.mxu0 0.0
        %486 = vmatpush1.msra.mxu0 0.0
        %487 = vmatprep.subr.mxu0 0.0
        %488 = vmatpush1.msra.mxu0 0.0
        %489 = vmatprep.subr.mxu0 0.0
        %490 = vmatpush1.msra.mxu0 0.0
        %491 = vmatprep.subr.mxu0 0.0
        %492 = vmatpush1.msra.mxu0 0.0
        %493 = vmatprep.subr.mxu0 0.0
        %494 = vmatpush1.msra.mxu0 0.0
        %495 = vmatprep.subr.mxu0 0.0
        %496 = vmatpush1.msra.mxu0 0.0
        %497 = vmatprep.subr.mxu0 0.0
        %498 = vmatpush1.msra.mxu0 0.0
        %499 = vmatprep.subr.mxu0 0.0
        %500 = vmatpush1.msra.mxu0 0.0
        %501 = vmatprep.subr.mxu0 0.0
        %502 = vmatpush1.msra.mxu0 0.0
        %503 = vmatprep.subr.mxu0 0.0
        %504 = vmatpush1.msra.mxu0 0.0
        %505 = vmatprep.subr.mxu0 0.0
        %506 = vmatpush1.msra.mxu0 0.0
        %507 = vmatprep.subr.mxu0 0.0
        %508 = vmatpush1.msra.mxu0 0.0
        %509 = vmatprep.subr.mxu0 0.0
        %510 = vmatpush1.msra.mxu0 0.0
        %511 = vmatprep.subr.mxu0 0.0
        %512 = vmatpush1.msra.mxu0 0.0
        %513 = vmatprep.subr.mxu0 0.0
        %514 = vmatpush1.msra.mxu0 0.0
        %515 = vmatprep.subr.mxu0 0.0
        %516 = vmatpush1.msra.mxu0 0.0
        %517 = vmatprep.subr.mxu0 0.0
        %518 = vmatpush1.msra.mxu0 0.0
        %519 = vmatprep.subr.mxu0 0.0
        %520 = vmatpush1.msra.mxu0 0.0
        %521 = vmatprep.subr.mxu0 0.0
        %522 = vmatpush1.msra.mxu0 0.0
        %523 = vmatprep.subr.mxu0 0.0
        %524 = vmatpush1.msra.mxu0 0.0
        %525 = vmatprep.subr.mxu0 0.0
        %526 = vmatpush1.msra.mxu0 0.0
        %527 = vmatprep.subr.mxu0 0.0
        %528 = vmatpush1.msra.mxu0 0.0
        %529 = vmatprep.subr.mxu0 0.0
        %530 = vmatpush1.msra.mxu0 0.0
        %531 = vmatprep.subr.mxu0 0.0
        %532 = vmatpush1.msra.mxu0 0.0
        %533 = vmatprep.subr.mxu0 0.0
        %534 = vmatpush1.msra.mxu0 0.0
        %535 = vmatprep.mubr.f32.mxu0 0.0
        %536 = vmatmul.mubr.f32.gmra.mrb[0].mxu0 %v469
        %v537 = vpop.f32.mrb[0].mxu0
        %v538 = vadd.f32 0.0, %v537
        %v539 = vpop.f32.mrb[0].mxu0
        %540 = vdwg.mxu0
        %v542 = vsel %vm467, %v461, 0
        %544 = vmatprep.subr.mxu0 0.0
        %545 = vmatpush1.msra.mxu0 %v462
        %546 = vmatprep.subr.mxu0 0.0
        %547 = vmatpush1.msra.mxu0 %v463
        %548 = vmatprep.subr.mxu0 0.0
        %549 = vmatpush1.msra.mxu0 0.0
        %550 = vmatprep.subr.mxu0 0.0
        %551 = vmatpush1.msra.mxu0 0.0
        %552 = vmatprep.subr.mxu0 0.0
        %553 = vmatpush1.msra.mxu0 0.0
        %554 = vmatprep.subr.mxu0 0.0
        %555 = vmatpush1.msra.mxu0 0.0
        %556 = vmatprep.subr.mxu0 0.0
        %557 = vmatpush1.msra.mxu0 0.0
        %558 = vmatprep.subr.mxu0 0.0
        %559 = vmatpush1.msra.mxu0 0.0
        %560 = vmatprep.subr.mxu0 0.0
        %561 = vmatpush1.msra.mxu0 0.0
        %562 = vmatprep.subr.mxu0 0.0
        %563 = vmatpush1.msra.mxu0 0.0
        %564 = vmatprep.subr.mxu0 0.0
        %565 = vmatpush1.msra.mxu0 0.0
        %566 = vmatprep.subr.mxu0 0.0
        %567 = vmatpush1.msra.mxu0 0.0
        %568 = vmatprep.subr.mxu0 0.0
        %569 = vmatpush1.msra.mxu0 0.0
        %570 = vmatprep.subr.mxu0 0.0
        %571 = vmatpush1.msra.mxu0 0.0
        %572 = vmatprep.subr.mxu0 0.0
        %573 = vmatpush1.msra.mxu0 0.0
        %574 = vmatprep.subr.mxu0 0.0
        %575 = vmatpush1.msra.mxu0 0.0
        %576 = vmatprep.subr.mxu0 0.0
        %577 = vmatpush1.msra.mxu0 0.0
        %578 = vmatprep.subr.mxu0 0.0
        %579 = vmatpush1.msra.mxu0 0.0
        %580 = vmatprep.subr.mxu0 0.0
        %581 = vmatpush1.msra.mxu0 0.0
        %582 = vmatprep.subr.mxu0 0.0
        %583 = vmatpush1.msra.mxu0 0.0
        %584 = vmatprep.subr.mxu0 0.0
        %585 = vmatpush1.msra.mxu0 0.0
        %586 = vmatprep.subr.mxu0 0.0
        %587 = vmatpush1.msra.mxu0 0.0
        %588 = vmatprep.subr.mxu0 0.0
        %589 = vmatpush1.msra.mxu0 0.0
        %590 = vmatprep.subr.mxu0 0.0
        %591 = vmatpush1.msra.mxu0 0.0
        %592 = vmatprep.subr.mxu0 0.0
        %593 = vmatpush1.msra.mxu0 0.0
        %594 = vmatprep.subr.mxu0 0.0
        %595 = vmatpush1.msra.mxu0 0.0
        %596 = vmatprep.subr.mxu0 0.0
        %597 = vmatpush1.msra.mxu0 0.0
        %598 = vmatprep.subr.mxu0 0.0
        %599 = vmatpush1.msra.mxu0 0.0
        %600 = vmatprep.subr.mxu0 0.0
        %601 = vmatpush1.msra.mxu0 0.0
        %602 = vmatprep.subr.mxu0 0.0
        %603 = vmatpush1.msra.mxu0 0.0
        %604 = vmatprep.subr.mxu0 0.0
        %605 = vmatpush1.msra.mxu0 0.0
        %606 = vmatprep.subr.mxu0 0.0
        %607 = vmatpush1.msra.mxu0 0.0
        %608 = vmatprep.mubr.f32.mxu0 0.0
        %609 = vmatmul.mubr.f32.gmra.mrb[0].mxu0 %v542
        %v610 = vpop.f32.mrb[0].mxu0
        %v611 = vadd.f32 %v538, %v610
        %v612 = vpop.f32.mrb[0].mxu0
        %613 = vdwg.mxu0
        %v614 = vld [vmem:[#allocation2 + $0x2] sm:$0xff]
        %v615 = vld [vmem:[%s3 + $0x20] sm:$0xff]
        %v616 = vld [vmem:[%s3 + $0x28] sm:$0xff]
        %v618 = vsel %vm467, %v614, 0
        %620 = vmatprep.subr.mxu0 0.0
        %621 = vmatpush1.msra.mxu0 %v615
        %622 = vmatprep.subr.mxu0 0.0
        %623 = vmatpush1.msra.mxu0 %v616
        %624 = vmatprep.subr.mxu0 0.0
        %625 = vmatpush1.msra.mxu0 0.0
        %626 = vmatprep.subr.mxu0 0.0
        %627 = vmatpush1.msra.mxu0 0.0
        %628 = vmatprep.subr.mxu0 0.0
        %629 = vmatpush1.msra.mxu0 0.0
        %630 = vmatprep.subr.mxu0 0.0
        %631 = vmatpush1.msra.mxu0 0.0
        %632 = vmatprep.subr.mxu0 0.0
        %633 = vmatpush1.msra.mxu0 0.0
        %634 = vmatprep.subr.mxu0 0.0
        %635 = vmatpush1.msra.mxu0 0.0
        %636 = vmatprep.subr.mxu0 0.0
        %637 = vmatpush1.msra.mxu0 0.0
        %638 = vmatprep.subr.mxu0 0.0
        %639 = vmatpush1.msra.mxu0 0.0
        %640 = vmatprep.subr.mxu0 0.0
        %641 = vmatpush1.msra.mxu0 0.0
        %642 = vmatprep.subr.mxu0 0.0
        %643 = vmatpush1.msra.mxu0 0.0
        %644 = vmatprep.subr.mxu0 0.0
        %645 = vmatpush1.msra.mxu0 0.0
        %646 = vmatprep.subr.mxu0 0.0
        %647 = vmatpush1.msra.mxu0 0.0
        %648 = vmatprep.subr.mxu0 0.0
        %649 = vmatpush1.msra.mxu0 0.0
        %650 = vmatprep.subr.mxu0 0.0
        %651 = vmatpush1.msra.mxu0 0.0
        %652 = vmatprep.subr.mxu0 0.0
        %653 = vmatpush1.msra.mxu0 0.0
        %654 = vmatprep.subr.mxu0 0.0
        %655 = vmatpush1.msra.mxu0 0.0
        %656 = vmatprep.subr.mxu0 0.0
        %657 = vmatpush1.msra.mxu0 0.0
        %658 = vmatprep.subr.mxu0 0.0
        %659 = vmatpush1.msra.mxu0 0.0
        %660 = vmatprep.subr.mxu0 0.0
        %661 = vmatpush1.msra.mxu0 0.0
        %662 = vmatprep.subr.mxu0 0.0
        %663 = vmatpush1.msra.mxu0 0.0
        %664 = vmatprep.subr.mxu0 0.0
        %665 = vmatpush1.msra.mxu0 0.0
        %666 = vmatprep.subr.mxu0 0.0
        %667 = vmatpush1.msra.mxu0 0.0
        %668 = vmatprep.subr.mxu0 0.0
        %669 = vmatpush1.msra.mxu0 0.0
        %670 = vmatprep.subr.mxu0 0.0
        %671 = vmatpush1.msra.mxu0 0.0
        %672 = vmatprep.subr.mxu0 0.0
        %673 = vmatpush1.msra.mxu0 0.0
        %674 = vmatprep.subr.mxu0 0.0
        %675 = vmatpush1.msra.mxu0 0.0
        %676 = vmatprep.subr.mxu0 0.0
        %677 = vmatpush1.msra.mxu0 0.0
        %678 = vmatprep.subr.mxu0 0.0
        %679 = vmatpush1.msra.mxu0 0.0
        %680 = vmatprep.subr.mxu0 0.0
        %681 = vmatpush1.msra.mxu0 0.0
        %682 = vmatprep.subr.mxu0 0.0
        %683 = vmatpush1.msra.mxu0 0.0
        %684 = vmatprep.mubr.f32.mxu0 0.0
        %685 = vmatmul.mubr.f32.gmra.mrb[0].mxu0 %v618
        %v686 = vpop.f32.mrb[0].mxu0
        %v687 = vadd.f32 0.0, %v686
        %v688 = vpop.f32.mrb[0].mxu0
        %689 = vdwg.mxu0
        %v690 = vadd.f32 %v611, %v687
        %v691 = vld [vmem:[#allocation2 + $0x3] sm:$0xff]
        %v692 = vld [vmem:[%s3 + $0x30] sm:$0xff]
        %v693 = vld [vmem:[%s3 + $0x38] sm:$0xff]
        %v695 = vsel %vm467, %v691, 0
        %697 = vmatprep.subr.mxu0 0.0
        %698 = vmatpush1.msra.mxu0 %v692
        %699 = vmatprep.subr.mxu0 0.0
        %700 = vmatpush1.msra.mxu0 %v693
        %701 = vmatprep.subr.mxu0 0.0
        %702 = vmatpush1.msra.mxu0 0.0
        %703 = vmatprep.subr.mxu0 0.0
        %704 = vmatpush1.msra.mxu0 0.0
        %705 = vmatprep.subr.mxu0 0.0
        %706 = vmatpush1.msra.mxu0 0.0
        %707 = vmatprep.subr.mxu0 0.0
        %708 = vmatpush1.msra.mxu0 0.0
        %709 = vmatprep.subr.mxu0 0.0
        %710 = vmatpush1.msra.mxu0 0.0
        %711 = vmatprep.subr.mxu0 0.0
        %712 = vmatpush1.msra.mxu0 0.0
        %713 = vmatprep.subr.mxu0 0.0
        %714 = vmatpush1.msra.mxu0 0.0
        %715 = vmatprep.subr.mxu0 0.0
        %716 = vmatpush1.msra.mxu0 0.0
        %717 = vmatprep.subr.mxu0 0.0
        %718 = vmatpush1.msra.mxu0 0.0
        %719 = vmatprep.subr.mxu0 0.0
        %720 = vmatpush1.msra.mxu0 0.0
        %721 = vmatprep.subr.mxu0 0.0
        %722 = vmatpush1.msra.mxu0 0.0
        %723 = vmatprep.subr.mxu0 0.0
        %724 = vmatpush1.msra.mxu0 0.0
        %725 = vmatprep.subr.mxu0 0.0
        %726 = vmatpush1.msra.mxu0 0.0
        %727 = vmatprep.subr.mxu0 0.0
        %728 = vmatpush1.msra.mxu0 0.0
        %729 = vmatprep.subr.mxu0 0.0
        %730 = vmatpush1.msra.mxu0 0.0
        %731 = vmatprep.subr.mxu0 0.0
        %732 = vmatpush1.msra.mxu0 0.0
        %733 = vmatprep.subr.mxu0 0.0
        %734 = vmatpush1.msra.mxu0 0.0
        %735 = vmatprep.subr.mxu0 0.0
        %736 = vmatpush1.msra.mxu0 0.0
        %737 = vmatprep.subr.mxu0 0.0
        %738 = vmatpush1.msra.mxu0 0.0
        %739 = vmatprep.subr.mxu0 0.0
        %740 = vmatpush1.msra.mxu0 0.0
        %741 = vmatprep.subr.mxu0 0.0
        %742 = vmatpush1.msra.mxu0 0.0
        %743 = vmatprep.subr.mxu0 0.0
        %744 = vmatpush1.msra.mxu0 0.0
        %745 = vmatprep.subr.mxu0 0.0
        %746 = vmatpush1.msra.mxu0 0.0
        %747 = vmatprep.subr.mxu0 0.0
        %748 = vmatpush1.msra.mxu0 0.0
        %749 = vmatprep.subr.mxu0 0.0
        %750 = vmatpush1.msra.mxu0 0.0
        %751 = vmatprep.subr.mxu0 0.0
        %752 = vmatpush1.msra.mxu0 0.0
        %753 = vmatprep.subr.mxu0 0.0
        %754 = vmatpush1.msra.mxu0 0.0
        %755 = vmatprep.subr.mxu0 0.0
        %756 = vmatpush1.msra.mxu0 0.0
        %757 = vmatprep.subr.mxu0 0.0
        %758 = vmatpush1.msra.mxu0 0.0
        %759 = vmatprep.subr.mxu0 0.0
        %760 = vmatpush1.msra.mxu0 0.0
        %761 = vmatprep.mubr.f32.mxu0 0.0
        %762 = vmatmul.mubr.f32.gmra.mrb[0].mxu0 %v695
        %v763 = vpop.f32.mrb[0].mxu0
        %v764 = vadd.f32 0.0, %v763
        %v765 = vpop.f32.mrb[0].mxu0
        %766 = vdwg.mxu0
        %v767 = vadd.f32 %v690, %v764
        %v768 = vld [vmem:[#allocation2 + $0x4] sm:$0xff]
        %v769 = vld [vmem:[%s3 + $0x40] sm:$0xff]
        %v770 = vld [vmem:[%s3 + $0x48] sm:$0xff]
        %v772 = vsel %vm467, %v768, 0
        %774 = vmatprep.subr.mxu0 0.0
        %775 = vmatpush1.msra.mxu0 %v769
        %776 = vmatprep.subr.mxu0 0.0
        %777 = vmatpush1.msra.mxu0 %v770
        %778 = vmatprep.subr.mxu0 0.0
        %779 = vmatpush1.msra.mxu0 0.0
        %780 = vmatprep.subr.mxu0 0.0
        %781 = vmatpush1.msra.mxu0 0.0
        %782 = vmatprep.subr.mxu0 0.0
        %783 = vmatpush1.msra.mxu0 0.0
        %784 = vmatprep.subr.mxu0 0.0
        %785 = vmatpush1.msra.mxu0 0.0
        %786 = vmatprep.subr.mxu0 0.0
        %787 = vmatpush1.msra.mxu0 0.0
        %788 = vmatprep.subr.mxu0 0.0
        %789 = vmatpush1.msra.mxu0 0.0
        %790 = vmatprep.subr.mxu0 0.0
        %791 = vmatpush1.msra.mxu0 0.0
        %792 = vmatprep.subr.mxu0 0.0
        %793 = vmatpush1.msra.mxu0 0.0
        %794 = vmatprep.subr.mxu0 0.0
        %795 = vmatpush1.msra.mxu0 0.0
        %796 = vmatprep.subr.mxu0 0.0
        %797 = vmatpush1.msra.mxu0 0.0
        %798 = vmatprep.subr.mxu0 0.0
        %799 = vmatpush1.msra.mxu0 0.0
        %800 = vmatprep.subr.mxu0 0.0
        %801 = vmatpush1.msra.mxu0 0.0
        %802 = vmatprep.subr.mxu0 0.0
        %803 = vmatpush1.msra.mxu0 0.0
        %804 = vmatprep.subr.mxu0 0.0
        %805 = vmatpush1.msra.mxu0 0.0
        %806 = vmatprep.subr.mxu0 0.0
        %807 = vmatpush1.msra.mxu0 0.0
        %808 = vmatprep.subr.mxu0 0.0
        %809 = vmatpush1.msra.mxu0 0.0
        %810 = vmatprep.subr.mxu0 0.0
        %811 = vmatpush1.msra.mxu0 0.0
        %812 = vmatprep.subr.mxu0 0.0
        %813 = vmatpush1.msra.mxu0 0.0
        %814 = vmatprep.subr.mxu0 0.0
        %815 = vmatpush1.msra.mxu0 0.0
        %816 = vmatprep.subr.mxu0 0.0
        %817 = vmatpush1.msra.mxu0 0.0
        %818 = vmatprep.subr.mxu0 0.0
        %819 = vmatpush1.msra.mxu0 0.0
        %820 = vmatprep.subr.mxu0 0.0
        %821 = vmatpush1.msra.mxu0 0.0
        %822 = vmatprep.subr.mxu0 0.0
        %823 = vmatpush1.msra.mxu0 0.0
        %824 = vmatprep.subr.mxu0 0.0
        %825 = vmatpush1.msra.mxu0 0.0
        %826 = vmatprep.subr.mxu0 0.0
        %827 = vmatpush1.msra.mxu0 0.0
        %828 = vmatprep.subr.mxu0 0.0
        %829 = vmatpush1.msra.mxu0 0.0
        %830 = vmatprep.subr.mxu0 0.0
        %831 = vmatpush1.msra.mxu0 0.0
        %832 = vmatprep.subr.mxu0 0.0
        %833 = vmatpush1.msra.mxu0 0.0
        %834 = vmatprep.subr.mxu0 0.0
        %835 = vmatpush1.msra.mxu0 0.0
        %836 = vmatprep.subr.mxu0 0.0
        %837 = vmatpush1.msra.mxu0 0.0
        %838 = vmatprep.mubr.f32.mxu0 0.0
        %839 = vmatmul.mubr.f32.gmra.mrb[0].mxu0 %v772
        %v840 = vpop.f32.mrb[0].mxu0
        %v841 = vadd.f32 0.0, %v840
        %v842 = vpop.f32.mrb[0].mxu0
        %843 = vdwg.mxu0
        %v844 = vadd.f32 %v767, %v841
        %v845 = vld [vmem:[#allocation2 + $0x6] sm:$0xff]
        %v846 = vld [vmem:[%s3 + $0x50] sm:$0xff]
        %v847 = vld [vmem:[%s3 + $0x58] sm:$0xff]
        %v849 = vsel %vm467, %v845, 0
        %851 = vmatprep.subr.mxu0 0.0
        %852 = vmatpush1.msra.mxu0 %v846
        %853 = vmatprep.subr.mxu0 0.0
        %854 = vmatpush1.msra.mxu0 %v847
        %855 = vmatprep.subr.mxu0 0.0
        %856 = vmatpush1.msra.mxu0 0.0
        %857 = vmatprep.subr.mxu0 0.0
        %858 = vmatpush1.msra.mxu0 0.0
        %859 = vmatprep.subr.mxu0 0.0
        %860 = vmatpush1.msra.mxu0 0.0
        %861 = vmatprep.subr.mxu0 0.0
        %862 = vmatpush1.msra.mxu0 0.0
        %863 = vmatprep.subr.mxu0 0.0
        %864 = vmatpush1.msra.mxu0 0.0
        %865 = vmatprep.subr.mxu0 0.0
        %866 = vmatpush1.msra.mxu0 0.0
        %867 = vmatprep.subr.mxu0 0.0
        %868 = vmatpush1.msra.mxu0 0.0
        %869 = vmatprep.subr.mxu0 0.0
        %870 = vmatpush1.msra.mxu0 0.0
        %871 = vmatprep.subr.mxu0 0.0
        %872 = vmatpush1.msra.mxu0 0.0
        %873 = vmatprep.subr.mxu0 0.0
        %874 = vmatpush1.msra.mxu0 0.0
        %875 = vmatprep.subr.mxu0 0.0
        %876 = vmatpush1.msra.mxu0 0.0
        %877 = vmatprep.subr.mxu0 0.0
        %878 = vmatpush1.msra.mxu0 0.0
        %879 = vmatprep.subr.mxu0 0.0
        %880 = vmatpush1.msra.mxu0 0.0
        %881 = vmatprep.subr.mxu0 0.0
        %882 = vmatpush1.msra.mxu0 0.0
        %883 = vmatprep.subr.mxu0 0.0
        %884 = vmatpush1.msra.mxu0 0.0
        %885 = vmatprep.subr.mxu0 0.0
        %886 = vmatpush1.msra.mxu0 0.0
        %887 = vmatprep.subr.mxu0 0.0
        %888 = vmatpush1.msra.mxu0 0.0
        %889 = vmatprep.subr.mxu0 0.0
        %890 = vmatpush1.msra.mxu0 0.0
        %891 = vmatprep.subr.mxu0 0.0
        %892 = vmatpush1.msra.mxu0 0.0
        %893 = vmatprep.subr.mxu0 0.0
        %894 = vmatpush1.msra.mxu0 0.0
        %895 = vmatprep.subr.mxu0 0.0
        %896 = vmatpush1.msra.mxu0 0.0
        %897 = vmatprep.subr.mxu0 0.0
        %898 = vmatpush1.msra.mxu0 0.0
        %899 = vmatprep.subr.mxu0 0.0
        %900 = vmatpush1.msra.mxu0 0.0
        %901 = vmatprep.subr.mxu0 0.0
        %902 = vmatpush1.msra.mxu0 0.0
        %903 = vmatprep.subr.mxu0 0.0
        %904 = vmatpush1.msra.mxu0 0.0
        %905 = vmatprep.subr.mxu0 0.0
        %906 = vmatpush1.msra.mxu0 0.0
        %907 = vmatprep.subr.mxu0 0.0
        %908 = vmatpush1.msra.mxu0 0.0
        %909 = vmatprep.subr.mxu0 0.0
        %910 = vmatpush1.msra.mxu0 0.0
        %911 = vmatprep.subr.mxu0 0.0
        %912 = vmatpush1.msra.mxu0 0.0
        %913 = vmatprep.subr.mxu0 0.0
        %914 = vmatpush1.msra.mxu0 0.0
        %915 = vmatprep.mubr.f32.mxu0 0.0
        %916 = vmatmul.mubr.f32.gmra.mrb[0].mxu0 %v849
        %v917 = vpop.f32.mrb[0].mxu0
        %v918 = vadd.f32 0.0, %v917
        %v919 = vpop.f32.mrb[0].mxu0
        %920 = vdwg.mxu0
        %v921 = vadd.f32 %v844, %v918
        %v922 = vld [vmem:[#allocation2 + $0x7] sm:$0xff]
        %v923 = vld [vmem:[%s3 + $0x60] sm:$0xff]
        %v924 = vld [vmem:[%s3 + $0x68] sm:$0xff]
        %v926 = vsel %vm467, %v922, 0
        %928 = vmatprep.subr.mxu0 0.0
        %929 = vmatpush1.msra.mxu0 %v923
        %930 = vmatprep.subr.mxu0 0.0
        %931 = vmatpush1.msra.mxu0 %v924
        %932 = vmatprep.subr.mxu0 0.0
        %933 = vmatpush1.msra.mxu0 0.0
        %934 = vmatprep.subr.mxu0 0.0
        %935 = vmatpush1.msra.mxu0 0.0
        %936 = vmatprep.subr.mxu0 0.0
        %937 = vmatpush1.msra.mxu0 0.0
        %938 = vmatprep.subr.mxu0 0.0
        %939 = vmatpush1.msra.mxu0 0.0
        %940 = vmatprep.subr.mxu0 0.0
        %941 = vmatpush1.msra.mxu0 0.0
        %942 = vmatprep.subr.mxu0 0.0
        %943 = vmatpush1.msra.mxu0 0.0
        %944 = vmatprep.subr.mxu0 0.0
        %945 = vmatpush1.msra.mxu0 0.0
        %946 = vmatprep.subr.mxu0 0.0
        %947 = vmatpush1.msra.mxu0 0.0
        %948 = vmatprep.subr.mxu0 0.0
        %949 = vmatpush1.msra.mxu0 0.0
        %950 = vmatprep.subr.mxu0 0.0
        %951 = vmatpush1.msra.mxu0 0.0
        %952 = vmatprep.subr.mxu0 0.0
        %953 = vmatpush1.msra.mxu0 0.0
        %954 = vmatprep.subr.mxu0 0.0
        %955 = vmatpush1.msra.mxu0 0.0
        %956 = vmatprep.subr.mxu0 0.0
        %957 = vmatpush1.msra.mxu0 0.0
        %958 = vmatprep.subr.mxu0 0.0
        %959 = vmatpush1.msra.mxu0 0.0
        %960 = vmatprep.subr.mxu0 0.0
        %961 = vmatpush1.msra.mxu0 0.0
        %962 = vmatprep.subr.mxu0 0.0
        %963 = vmatpush1.msra.mxu0 0.0
        %964 = vmatprep.subr.mxu0 0.0
        %965 = vmatpush1.msra.mxu0 0.0
        %966 = vmatprep.subr.mxu0 0.0
        %967 = vmatpush1.msra.mxu0 0.0
        %968 = vmatprep.subr.mxu0 0.0
        %969 = vmatpush1.msra.mxu0 0.0
        %970 = vmatprep.subr.mxu0 0.0
        %971 = vmatpush1.msra.mxu0 0.0
        %972 = vmatprep.subr.mxu0 0.0
        %973 = vmatpush1.msra.mxu0 0.0
        %974 = vmatprep.subr.mxu0 0.0
        %975 = vmatpush1.msra.mxu0 0.0
        %976 = vmatprep.subr.mxu0 0.0
        %977 = vmatpush1.msra.mxu0 0.0
        %978 = vmatprep.subr.mxu0 0.0
        %979 = vmatpush1.msra.mxu0 0.0
        %980 = vmatprep.subr.mxu0 0.0
        %981 = vmatpush1.msra.mxu0 0.0
        %982 = vmatprep.subr.mxu0 0.0
        %983 = vmatpush1.msra.mxu0 0.0
        %984 = vmatprep.subr.mxu0 0.0
        %985 = vmatpush1.msra.mxu0 0.0
        %986 = vmatprep.subr.mxu0 0.0
        %987 = vmatpush1.msra.mxu0 0.0
        %988 = vmatprep.subr.mxu0 0.0
        %989 = vmatpush1.msra.mxu0 0.0
        %990 = vmatprep.subr.mxu0 0.0
        %991 = vmatpush1.msra.mxu0 0.0
        %992 = vmatprep.mubr.f32.mxu0 0.0
        %993 = vmatmul.mubr.f32.gmra.mrb[0].mxu0 %v926
        %v994 = vpop.f32.mrb[0].mxu0
        %v995 = vadd.f32 0.0, %v994
        %v996 = vpop.f32.mrb[0].mxu0
        %997 = vdwg.mxu0
        %v998 = vadd.f32 %v921, %v995
        %v999 = vld [vmem:[#allocation2 + $0x8] sm:$0xff]
        %v1000 = vld [vmem:[%s3 + $0x70] sm:$0xff]
        %v1001 = vld [vmem:[%s3 + $0x78] sm:$0xff]
        %v1003 = vsel %vm467, %v999, 0
        %1005 = vmatprep.subr.mxu0 0.0
        %1006 = vmatpush1.msra.mxu0 %v1000
        %1007 = vmatprep.subr.mxu0 0.0
        %1008 = vmatpush1.msra.mxu0 %v1001
        %1009 = vmatprep.subr.mxu0 0.0
        %1010 = vmatpush1.msra.mxu0 0.0
        %1011 = vmatprep.subr.mxu0 0.0
        %1012 = vmatpush1.msra.mxu0 0.0
        %1013 = vmatprep.subr.mxu0 0.0
        %1014 = vmatpush1.msra.mxu0 0.0
        %1015 = vmatprep.subr.mxu0 0.0
        %1016 = vmatpush1.msra.mxu0 0.0
        %1017 = vmatprep.subr.mxu0 0.0
        %1018 = vmatpush1.msra.mxu0 0.0
        %1019 = vmatprep.subr.mxu0 0.0
        %1020 = vmatpush1.msra.mxu0 0.0
        %1021 = vmatprep.subr.mxu0 0.0
        %1022 = vmatpush1.msra.mxu0 0.0
        %1023 = vmatprep.subr.mxu0 0.0
        %1024 = vmatpush1.msra.mxu0 0.0
        %1025 = vmatprep.subr.mxu0 0.0
        %1026 = vmatpush1.msra.mxu0 0.0
        %1027 = vmatprep.subr.mxu0 0.0
        %1028 = vmatpush1.msra.mxu0 0.0
        %1029 = vmatprep.subr.mxu0 0.0
        %1030 = vmatpush1.msra.mxu0 0.0
        %1031 = vmatprep.subr.mxu0 0.0
        %1032 = vmatpush1.msra.mxu0 0.0
        %1033 = vmatprep.subr.mxu0 0.0
        %1034 = vmatpush1.msra.mxu0 0.0
        %1035 = vmatprep.subr.mxu0 0.0
        %1036 = vmatpush1.msra.mxu0 0.0
        %1037 = vmatprep.subr.mxu0 0.0
        %1038 = vmatpush1.msra.mxu0 0.0
        %1039 = vmatprep.subr.mxu0 0.0
        %1040 = vmatpush1.msra.mxu0 0.0
        %1041 = vmatprep.subr.mxu0 0.0
        %1042 = vmatpush1.msra.mxu0 0.0
        %1043 = vmatprep.subr.mxu0 0.0
        %1044 = vmatpush1.msra.mxu0 0.0
        %1045 = vmatprep.subr.mxu0 0.0
        %1046 = vmatpush1.msra.mxu0 0.0
        %1047 = vmatprep.subr.mxu0 0.0
        %1048 = vmatpush1.msra.mxu0 0.0
        %1049 = vmatprep.subr.mxu0 0.0
        %1050 = vmatpush1.msra.mxu0 0.0
        %1051 = vmatprep.subr.mxu0 0.0
        %1052 = vmatpush1.msra.mxu0 0.0
        %1053 = vmatprep.subr.mxu0 0.0
        %1054 = vmatpush1.msra.mxu0 0.0
        %1055 = vmatprep.subr.mxu0 0.0
        %1056 = vmatpush1.msra.mxu0 0.0
        %1057 = vmatprep.subr.mxu0 0.0
        %1058 = vmatpush1.msra.mxu0 0.0
        %1059 = vmatprep.subr.mxu0 0.0
        %1060 = vmatpush1.msra.mxu0 0.0
        %1061 = vmatprep.subr.mxu0 0.0
        %1062 = vmatpush1.msra.mxu0 0.0
        %1063 = vmatprep.subr.mxu0 0.0
        %1064 = vmatpush1.msra.mxu0 0.0
        %1065 = vmatprep.subr.mxu0 0.0
        %1066 = vmatpush1.msra.mxu0 0.0
        %1067 = vmatprep.subr.mxu0 0.0
        %1068 = vmatpush1.msra.mxu0 0.0
        %1069 = vmatprep.mubr.f32.mxu0 0.0
        %1070 = vmatmul.mubr.f32.gmra.mrb[0].mxu0 %v1003
        %v1071 = vpop.f32.mrb[0].mxu0
        %v1072 = vadd.f32 0.0, %v1071
        %v1073 = vpop.f32.mrb[0].mxu0
        %1074 = vdwg.mxu0
        %v1075 = vadd.f32 %v998, %v1072
        %v1076 = vld [vmem:[#allocation2 + $0x9] sm:$0xff]
        %v1077 = vld [vmem:[%s3 + $0x80] sm:$0xff]
        %v1078 = vld [vmem:[%s3 + $0x88] sm:$0xff]
        %v1080 = vsel %vm467, %v1076, 0
        %1082 = vmatprep.subr.mxu0 0.0
        %1083 = vmatpush1.msra.mxu0 %v1077
        %1084 = vmatprep.subr.mxu0 0.0
        %1085 = vmatpush1.msra.mxu0 %v1078
        %1086 = vmatprep.subr.mxu0 0.0
        %1087 = vmatpush1.msra.mxu0 0.0
        %1088 = vmatprep.subr.mxu0 0.0
        %1089 = vmatpush1.msra.mxu0 0.0
        %1090 = vmatprep.subr.mxu0 0.0
        %1091 = vmatpush1.msra.mxu0 0.0
        %1092 = vmatprep.subr.mxu0 0.0
        %1093 = vmatpush1.msra.mxu0 0.0
        %1094 = vmatprep.subr.mxu0 0.0
        %1095 = vmatpush1.msra.mxu0 0.0
        %1096 = vmatprep.subr.mxu0 0.0
        %1097 = vmatpush1.msra.mxu0 0.0
        %1098 = vmatprep.subr.mxu0 0.0
        %1099 = vmatpush1.msra.mxu0 0.0
        %1100 = vmatprep.subr.mxu0 0.0
        %1101 = vmatpush1.msra.mxu0 0.0
        %1102 = vmatprep.subr.mxu0 0.0
        %1103 = vmatpush1.msra.mxu0 0.0
        %1104 = vmatprep.subr.mxu0 0.0
        %1105 = vmatpush1.msra.mxu0 0.0
        %1106 = vmatprep.subr.mxu0 0.0
        %1107 = vmatpush1.msra.mxu0 0.0
        %1108 = vmatprep.subr.mxu0 0.0
        %1109 = vmatpush1.msra.mxu0 0.0
        %1110 = vmatprep.subr.mxu0 0.0
        %1111 = vmatpush1.msra.mxu0 0.0
        %1112 = vmatprep.subr.mxu0 0.0
        %1113 = vmatpush1.msra.mxu0 0.0
        %1114 = vmatprep.subr.mxu0 0.0
        %1115 = vmatpush1.msra.mxu0 0.0
        %1116 = vmatprep.subr.mxu0 0.0
        %1117 = vmatpush1.msra.mxu0 0.0
        %1118 = vmatprep.subr.mxu0 0.0
        %1119 = vmatpush1.msra.mxu0 0.0
        %1120 = vmatprep.subr.mxu0 0.0
        %1121 = vmatpush1.msra.mxu0 0.0
        %1122 = vmatprep.subr.mxu0 0.0
        %1123 = vmatpush1.msra.mxu0 0.0
        %1124 = vmatprep.subr.mxu0 0.0
        %1125 = vmatpush1.msra.mxu0 0.0
        %1126 = vmatprep.subr.mxu0 0.0
        %1127 = vmatpush1.msra.mxu0 0.0
        %1128 = vmatprep.subr.mxu0 0.0
        %1129 = vmatpush1.msra.mxu0 0.0
        %1130 = vmatprep.subr.mxu0 0.0
        %1131 = vmatpush1.msra.mxu0 0.0
        %1132 = vmatprep.subr.mxu0 0.0
        %1133 = vmatpush1.msra.mxu0 0.0
        %1134 = vmatprep.subr.mxu0 0.0
        %1135 = vmatpush1.msra.mxu0 0.0
        %1136 = vmatprep.subr.mxu0 0.0
        %1137 = vmatpush1.msra.mxu0 0.0
        %1138 = vmatprep.subr.mxu0 0.0
        %1139 = vmatpush1.msra.mxu0 0.0
        %1140 = vmatprep.subr.mxu0 0.0
        %1141 = vmatpush1.msra.mxu0 0.0
        %1142 = vmatprep.subr.mxu0 0.0
        %1143 = vmatpush1.msra.mxu0 0.0
        %1144 = vmatprep.subr.mxu0 0.0
        %1145 = vmatpush1.msra.mxu0 0.0
        %1146 = vmatprep.mubr.f32.mxu0 0.0
        %1147 = vmatmul.mubr.f32.gmra.mrb[0].mxu0 %v1080
        %v1148 = vpop.f32.mrb[0].mxu0
        %v1149 = vadd.f32 0.0, %v1148
        %v1150 = vpop.f32.mrb[0].mxu0
        %1151 = vdwg.mxu0
        %v1152 = vadd.f32 %v1075, %v1149
        %v1153 = vld [vmem:[#allocation2 + $0xa] sm:$0xff]
        %v1154 = vld [vmem:[%s3 + $0x90] sm:$0xff]
        %v1155 = vld [vmem:[%s3 + $0x98] sm:$0xff]
        %v1157 = vsel %vm467, %v1153, 0
        %1159 = vmatprep.subr.mxu0 0.0
        %1160 = vmatpush1.msra.mxu0 %v1154
        %1161 = vmatprep.subr.mxu0 0.0
        %1162 = vmatpush1.msra.mxu0 %v1155
        %1163 = vmatprep.subr.mxu0 0.0
        %1164 = vmatpush1.msra.mxu0 0.0
        %1165 = vmatprep.subr.mxu0 0.0
        %1166 = vmatpush1.msra.mxu0 0.0
        %1167 = vmatprep.subr.mxu0 0.0
        %1168 = vmatpush1.msra.mxu0 0.0
        %1169 = vmatprep.subr.mxu0 0.0
        %1170 = vmatpush1.msra.mxu0 0.0
        %1171 = vmatprep.subr.mxu0 0.0
        %1172 = vmatpush1.msra.mxu0 0.0
        %1173 = vmatprep.subr.mxu0 0.0
        %1174 = vmatpush1.msra.mxu0 0.0
        %1175 = vmatprep.subr.mxu0 0.0
        %1176 = vmatpush1.msra.mxu0 0.0
        %1177 = vmatprep.subr.mxu0 0.0
        %1178 = vmatpush1.msra.mxu0 0.0
        %1179 = vmatprep.subr.mxu0 0.0
        %1180 = vmatpush1.msra.mxu0 0.0
        %1181 = vmatprep.subr.mxu0 0.0
        %1182 = vmatpush1.msra.mxu0 0.0
        %1183 = vmatprep.subr.mxu0 0.0
        %1184 = vmatpush1.msra.mxu0 0.0
        %1185 = vmatprep.subr.mxu0 0.0
        %1186 = vmatpush1.msra.mxu0 0.0
        %1187 = vmatprep.subr.mxu0 0.0
        %1188 = vmatpush1.msra.mxu0 0.0
        %1189 = vmatprep.subr.mxu0 0.0
        %1190 = vmatpush1.msra.mxu0 0.0
        %1191 = vmatprep.subr.mxu0 0.0
        %1192 = vmatpush1.msra.mxu0 0.0
        %1193 = vmatprep.subr.mxu0 0.0
        %1194 = vmatpush1.msra.mxu0 0.0
        %1195 = vmatprep.subr.mxu0 0.0
        %1196 = vmatpush1.msra.mxu0 0.0
        %1197 = vmatprep.subr.mxu0 0.0
        %1198 = vmatpush1.msra.mxu0 0.0
        %1199 = vmatprep.subr.mxu0 0.0
        %1200 = vmatpush1.msra.mxu0 0.0
        %1201 = vmatprep.subr.mxu0 0.0
        %1202 = vmatpush1.msra.mxu0 0.0
        %1203 = vmatprep.subr.mxu0 0.0
        %1204 = vmatpush1.msra.mxu0 0.0
        %1205 = vmatprep.subr.mxu0 0.0
        %1206 = vmatpush1.msra.mxu0 0.0
        %1207 = vmatprep.subr.mxu0 0.0
        %1208 = vmatpush1.msra.mxu0 0.0
        %1209 = vmatprep.subr.mxu0 0.0
        %1210 = vmatpush1.msra.mxu0 0.0
        %1211 = vmatprep.subr.mxu0 0.0
        %1212 = vmatpush1.msra.mxu0 0.0
        %1213 = vmatprep.subr.mxu0 0.0
        %1214 = vmatpush1.msra.mxu0 0.0
        %1215 = vmatprep.subr.mxu0 0.0
        %1216 = vmatpush1.msra.mxu0 0.0
        %1217 = vmatprep.subr.mxu0 0.0
        %1218 = vmatpush1.msra.mxu0 0.0
        %1219 = vmatprep.subr.mxu0 0.0
        %1220 = vmatpush1.msra.mxu0 0.0
        %1221 = vmatprep.subr.mxu0 0.0
        %1222 = vmatpush1.msra.mxu0 0.0
        %1223 = vmatprep.mubr.f32.mxu0 0.0
        %1224 = vmatmul.mubr.f32.gmra.mrb[0].mxu0 %v1157
        %v1225 = vpop.f32.mrb[0].mxu0
        %v1226 = vadd.f32 0.0, %v1225
        %v1227 = vpop.f32.mrb[0].mxu0
        %1228 = vdwg.mxu0
        %v1229 = vadd.f32 %v1152, %v1226
        %v1230 = vld [vmem:[#allocation2 + $0xc] sm:$0xff]
        %v1231 = vld [vmem:[%s3 + $0xa0] sm:$0xff]
        %v1232 = vld [vmem:[%s3 + $0xa8] sm:$0xff]
        %v1234 = vsel %vm467, %v1230, 0
        %1236 = vmatprep.subr.mxu0 0.0
        %1237 = vmatpush1.msra.mxu0 %v1231
        %1238 = vmatprep.subr.mxu0 0.0
        %1239 = vmatpush1.msra.mxu0 %v1232
        %1240 = vmatprep.subr.mxu0 0.0
        %1241 = vmatpush1.msra.mxu0 0.0
        %1242 = vmatprep.subr.mxu0 0.0
        %1243 = vmatpush1.msra.mxu0 0.0
        %1244 = vmatprep.subr.mxu0 0.0
        %1245 = vmatpush1.msra.mxu0 0.0
        %1246 = vmatprep.subr.mxu0 0.0
        %1247 = vmatpush1.msra.mxu0 0.0
        %1248 = vmatprep.subr.mxu0 0.0
        %1249 = vmatpush1.msra.mxu0 0.0
        %1250 = vmatprep.subr.mxu0 0.0
        %1251 = vmatpush1.msra.mxu0 0.0
        %1252 = vmatprep.subr.mxu0 0.0
        %1253 = vmatpush1.msra.mxu0 0.0
        %1254 = vmatprep.subr.mxu0 0.0
        %1255 = vmatpush1.msra.mxu0 0.0
        %1256 = vmatprep.subr.mxu0 0.0
        %1257 = vmatpush1.msra.mxu0 0.0
        %1258 = vmatprep.subr.mxu0 0.0
        %1259 = vmatpush1.msra.mxu0 0.0
        %1260 = vmatprep.subr.mxu0 0.0
        %1261 = vmatpush1.msra.mxu0 0.0
        %1262 = vmatprep.subr.mxu0 0.0
        %1263 = vmatpush1.msra.mxu0 0.0
        %1264 = vmatprep.subr.mxu0 0.0
        %1265 = vmatpush1.msra.mxu0 0.0
        %1266 = vmatprep.subr.mxu0 0.0
        %1267 = vmatpush1.msra.mxu0 0.0
        %1268 = vmatprep.subr.mxu0 0.0
        %1269 = vmatpush1.msra.mxu0 0.0
        %1270 = vmatprep.subr.mxu0 0.0
        %1271 = vmatpush1.msra.mxu0 0.0
        %1272 = vmatprep.subr.mxu0 0.0
        %1273 = vmatpush1.msra.mxu0 0.0
        %1274 = vmatprep.subr.mxu0 0.0
        %1275 = vmatpush1.msra.mxu0 0.0
        %1276 = vmatprep.subr.mxu0 0.0
        %1277 = vmatpush1.msra.mxu0 0.0
        %1278 = vmatprep.subr.mxu0 0.0
        %1279 = vmatpush1.msra.mxu0 0.0
        %1280 = vmatprep.subr.mxu0 0.0
        %1281 = vmatpush1.msra.mxu0 0.0
        %1282 = vmatprep.subr.mxu0 0.0
        %1283 = vmatpush1.msra.mxu0 0.0
        %1284 = vmatprep.subr.mxu0 0.0
        %1285 = vmatpush1.msra.mxu0 0.0
        %1286 = vmatprep.subr.mxu0 0.0
        %1287 = vmatpush1.msra.mxu0 0.0
        %1288 = vmatprep.subr.mxu0 0.0
        %1289 = vmatpush1.msra.mxu0 0.0
        %1290 = vmatprep.subr.mxu0 0.0
        %1291 = vmatpush1.msra.mxu0 0.0
        %1292 = vmatprep.subr.mxu0 0.0
        %1293 = vmatpush1.msra.mxu0 0.0
        %1294 = vmatprep.subr.mxu0 0.0
        %1295 = vmatpush1.msra.mxu0 0.0
        %1296 = vmatprep.subr.mxu0 0.0
        %1297 = vmatpush1.msra.mxu0 0.0
        %1298 = vmatprep.subr.mxu0 0.0
        %1299 = vmatpush1.msra.mxu0 0.0
        %1300 = vmatprep.mubr.f32.mxu0 0.0
        %1301 = vmatmul.mubr.f32.gmra.mrb[0].mxu0 %v1234
        %v1302 = vpop.f32.mrb[0].mxu0
        %v1303 = vadd.f32 0.0, %v1302
        %v1304 = vpop.f32.mrb[0].mxu0
        %1305 = vdwg.mxu0
        %v1306 = vadd.f32 %v1229, %v1303
        %v1307 = vld [vmem:[#allocation2 + $0xd] sm:$0xff]
        %v1308 = vld [vmem:[%s3 + $0xb0] sm:$0xff]
        %v1309 = vld [vmem:[%s3 + $0xb8] sm:$0xff]
        %v1311 = vsel %vm467, %v1307, 0
        %1313 = vmatprep.subr.mxu0 0.0
        %1314 = vmatpush1.msra.mxu0 %v1308
        %1315 = vmatprep.subr.mxu0 0.0
        %1316 = vmatpush1.msra.mxu0 %v1309
        %1317 = vmatprep.subr.mxu0 0.0
        %1318 = vmatpush1.msra.mxu0 0.0
        %1319 = vmatprep.subr.mxu0 0.0
        %1320 = vmatpush1.msra.mxu0 0.0
        %1321 = vmatprep.subr.mxu0 0.0
        %1322 = vmatpush1.msra.mxu0 0.0
        %1323 = vmatprep.subr.mxu0 0.0
        %1324 = vmatpush1.msra.mxu0 0.0
        %1325 = vmatprep.subr.mxu0 0.0
        %1326 = vmatpush1.msra.mxu0 0.0
        %1327 = vmatprep.subr.mxu0 0.0
        %1328 = vmatpush1.msra.mxu0 0.0
        %1329 = vmatprep.subr.mxu0 0.0
        %1330 = vmatpush1.msra.mxu0 0.0
        %1331 = vmatprep.subr.mxu0 0.0
        %1332 = vmatpush1.msra.mxu0 0.0
        %1333 = vmatprep.subr.mxu0 0.0
        %1334 = vmatpush1.msra.mxu0 0.0
        %1335 = vmatprep.subr.mxu0 0.0
        %1336 = vmatpush1.msra.mxu0 0.0
        %1337 = vmatprep.subr.mxu0 0.0
        %1338 = vmatpush1.msra.mxu0 0.0
        %1339 = vmatprep.subr.mxu0 0.0
        %1340 = vmatpush1.msra.mxu0 0.0
        %1341 = vmatprep.subr.mxu0 0.0
        %1342 = vmatpush1.msra.mxu0 0.0
        %1343 = vmatprep.subr.mxu0 0.0
        %1344 = vmatpush1.msra.mxu0 0.0
        %1345 = vmatprep.subr.mxu0 0.0
        %1346 = vmatpush1.msra.mxu0 0.0
        %1347 = vmatprep.subr.mxu0 0.0
        %1348 = vmatpush1.msra.mxu0 0.0
        %1349 = vmatprep.subr.mxu0 0.0
        %1350 = vmatpush1.msra.mxu0 0.0
        %1351 = vmatprep.subr.mxu0 0.0
        %1352 = vmatpush1.msra.mxu0 0.0
        %1353 = vmatprep.subr.mxu0 0.0
        %1354 = vmatpush1.msra.mxu0 0.0
        %1355 = vmatprep.subr.mxu0 0.0
        %1356 = vmatpush1.msra.mxu0 0.0
        %1357 = vmatprep.subr.mxu0 0.0
        %1358 = vmatpush1.msra.mxu0 0.0
        %1359 = vmatprep.subr.mxu0 0.0
        %1360 = vmatpush1.msra.mxu0 0.0
        %1361 = vmatprep.subr.mxu0 0.0
        %1362 = vmatpush1.msra.mxu0 0.0
        %1363 = vmatprep.subr.mxu0 0.0
        %1364 = vmatpush1.msra.mxu0 0.0
        %1365 = vmatprep.subr.mxu0 0.0
        %1366 = vmatpush1.msra.mxu0 0.0
        %1367 = vmatprep.subr.mxu0 0.0
        %1368 = vmatpush1.msra.mxu0 0.0
        %1369 = vmatprep.subr.mxu0 0.0
        %1370 = vmatpush1.msra.mxu0 0.0
        %1371 = vmatprep.subr.mxu0 0.0
        %1372 = vmatpush1.msra.mxu0 0.0
        %1373 = vmatprep.subr.mxu0 0.0
        %1374 = vmatpush1.msra.mxu0 0.0
        %1375 = vmatprep.subr.mxu0 0.0
        %1376 = vmatpush1.msra.mxu0 0.0
        %1377 = vmatprep.mubr.f32.mxu0 0.0
        %1378 = vmatmul.mubr.f32.gmra.mrb[0].mxu0 %v1311
        %v1379 = vpop.f32.mrb[0].mxu0
        %v1380 = vadd.f32 0.0, %v1379
        %v1381 = vpop.f32.mrb[0].mxu0
        %1382 = vdwg.mxu0
        %v1383 = vadd.f32 %v1306, %v1380
        %v1384 = vld [vmem:[#allocation2 + $0xe] sm:$0xff]
        %v1385 = vld [vmem:[%s3 + $0xc0] sm:$0xff]
        %v1386 = vld [vmem:[%s3 + $0xc8] sm:$0xff]
        %v1388 = vsel %vm467, %v1384, 0
        %1390 = vmatprep.subr.mxu0 0.0
        %1391 = vmatpush1.msra.mxu0 %v1385
        %1392 = vmatprep.subr.mxu0 0.0
        %1393 = vmatpush1.msra.mxu0 %v1386
        %1394 = vmatprep.subr.mxu0 0.0
        %1395 = vmatpush1.msra.mxu0 0.0
        %1396 = vmatprep.subr.mxu0 0.0
        %1397 = vmatpush1.msra.mxu0 0.0
        %1398 = vmatprep.subr.mxu0 0.0
        %1399 = vmatpush1.msra.mxu0 0.0
        %1400 = vmatprep.subr.mxu0 0.0
        %1401 = vmatpush1.msra.mxu0 0.0
        %1402 = vmatprep.subr.mxu0 0.0
        %1403 = vmatpush1.msra.mxu0 0.0
        %1404 = vmatprep.subr.mxu0 0.0
        %1405 = vmatpush1.msra.mxu0 0.0
        %1406 = vmatprep.subr.mxu0 0.0
        %1407 = vmatpush1.msra.mxu0 0.0
        %1408 = vmatprep.subr.mxu0 0.0
        %1409 = vmatpush1.msra.mxu0 0.0
        %1410 = vmatprep.subr.mxu0 0.0
        %1411 = vmatpush1.msra.mxu0 0.0
        %1412 = vmatprep.subr.mxu0 0.0
        %1413 = vmatpush1.msra.mxu0 0.0
        %1414 = vmatprep.subr.mxu0 0.0
        %1415 = vmatpush1.msra.mxu0 0.0
        %1416 = vmatprep.subr.mxu0 0.0
        %1417 = vmatpush1.msra.mxu0 0.0
        %1418 = vmatprep.subr.mxu0 0.0
        %1419 = vmatpush1.msra.mxu0 0.0
        %1420 = vmatprep.subr.mxu0 0.0
        %1421 = vmatpush1.msra.mxu0 0.0
        %1422 = vmatprep.subr.mxu0 0.0
        %1423 = vmatpush1.msra.mxu0 0.0
        %1424 = vmatprep.subr.mxu0 0.0
        %1425 = vmatpush1.msra.mxu0 0.0
        %1426 = vmatprep.subr.mxu0 0.0
        %1427 = vmatpush1.msra.mxu0 0.0
        %1428 = vmatprep.subr.mxu0 0.0
        %1429 = vmatpush1.msra.mxu0 0.0
        %1430 = vmatprep.subr.mxu0 0.0
        %1431 = vmatpush1.msra.mxu0 0.0
        %1432 = vmatprep.subr.mxu0 0.0
        %1433 = vmatpush1.msra.mxu0 0.0
        %1434 = vmatprep.subr.mxu0 0.0
        %1435 = vmatpush1.msra.mxu0 0.0
        %1436 = vmatprep.subr.mxu0 0.0
        %1437 = vmatpush1.msra.mxu0 0.0
        %1438 = vmatprep.subr.mxu0 0.0
        %1439 = vmatpush1.msra.mxu0 0.0
        %1440 = vmatprep.subr.mxu0 0.0
        %1441 = vmatpush1.msra.mxu0 0.0
        %1442 = vmatprep.subr.mxu0 0.0
        %1443 = vmatpush1.msra.mxu0 0.0
        %1444 = vmatprep.subr.mxu0 0.0
        %1445 = vmatpush1.msra.mxu0 0.0
        %1446 = vmatprep.subr.mxu0 0.0
        %1447 = vmatpush1.msra.mxu0 0.0
        %1448 = vmatprep.subr.mxu0 0.0
        %1449 = vmatpush1.msra.mxu0 0.0
        %1450 = vmatprep.subr.mxu0 0.0
        %1451 = vmatpush1.msra.mxu0 0.0
        %1452 = vmatprep.subr.mxu0 0.0
        %1453 = vmatpush1.msra.mxu0 0.0
        %1454 = vmatprep.mubr.f32.mxu0 0.0
        %1455 = vmatmul.mubr.f32.gmra.mrb[0].mxu0 %v1388
        %v1456 = vpop.f32.mrb[0].mxu0
        %v1457 = vadd.f32 0.0, %v1456
        %v1458 = vpop.f32.mrb[0].mxu0
        %1459 = vdwg.mxu0
        %v1460 = vadd.f32 %v1383, %v1457
        %v1461 = vld [vmem:[#allocation2 + $0xf] sm:$0xff]
        %v1462 = vld [vmem:[%s3 + $0xd0] sm:$0xff]
        %v1463 = vld [vmem:[%s3 + $0xd8] sm:$0xff]
        %v1465 = vsel %vm467, %v1461, 0
        %1467 = vmatprep.subr.mxu0 0.0
        %1468 = vmatpush1.msra.mxu0 %v1462
        %1469 = vmatprep.subr.mxu0 0.0
        %1470 = vmatpush1.msra.mxu0 %v1463
        %1471 = vmatprep.subr.mxu0 0.0
        %1472 = vmatpush1.msra.mxu0 0.0
        %1473 = vmatprep.subr.mxu0 0.0
        %1474 = vmatpush1.msra.mxu0 0.0
        %1475 = vmatprep.subr.mxu0 0.0
        %1476 = vmatpush1.msra.mxu0 0.0
        %1477 = vmatprep.subr.mxu0 0.0
        %1478 = vmatpush1.msra.mxu0 0.0
        %1479 = vmatprep.subr.mxu0 0.0
        %1480 = vmatpush1.msra.mxu0 0.0
        %1481 = vmatprep.subr.mxu0 0.0
        %1482 = vmatpush1.msra.mxu0 0.0
        %1483 = vmatprep.subr.mxu0 0.0
        %1484 = vmatpush1.msra.mxu0 0.0
        %1485 = vmatprep.subr.mxu0 0.0
        %1486 = vmatpush1.msra.mxu0 0.0
        %1487 = vmatprep.subr.mxu0 0.0
        %1488 = vmatpush1.msra.mxu0 0.0
        %1489 = vmatprep.subr.mxu0 0.0
        %1490 = vmatpush1.msra.mxu0 0.0
        %1491 = vmatprep.subr.mxu0 0.0
        %1492 = vmatpush1.msra.mxu0 0.0
        %1493 = vmatprep.subr.mxu0 0.0
        %1494 = vmatpush1.msra.mxu0 0.0
        %1495 = vmatprep.subr.mxu0 0.0
        %1496 = vmatpush1.msra.mxu0 0.0
        %1497 = vmatprep.subr.mxu0 0.0
        %1498 = vmatpush1.msra.mxu0 0.0
        %1499 = vmatprep.subr.mxu0 0.0
        %1500 = vmatpush1.msra.mxu0 0.0
        %1501 = vmatprep.subr.mxu0 0.0
        %1502 = vmatpush1.msra.mxu0 0.0
        %1503 = vmatprep.subr.mxu0 0.0
        %1504 = vmatpush1.msra.mxu0 0.0
        %1505 = vmatprep.subr.mxu0 0.0
        %1506 = vmatpush1.msra.mxu0 0.0
        %1507 = vmatprep.subr.mxu0 0.0
        %1508 = vmatpush1.msra.mxu0 0.0
        %1509 = vmatprep.subr.mxu0 0.0
        %1510 = vmatpush1.msra.mxu0 0.0
        %1511 = vmatprep.subr.mxu0 0.0
        %1512 = vmatpush1.msra.mxu0 0.0
        %1513 = vmatprep.subr.mxu0 0.0
        %1514 = vmatpush1.msra.mxu0 0.0
        %1515 = vmatprep.subr.mxu0 0.0
        %1516 = vmatpush1.msra.mxu0 0.0
        %1517 = vmatprep.subr.mxu0 0.0
        %1518 = vmatpush1.msra.mxu0 0.0
        %1519 = vmatprep.subr.mxu0 0.0
        %1520 = vmatpush1.msra.mxu0 0.0
        %1521 = vmatprep.subr.mxu0 0.0
        %1522 = vmatpush1.msra.mxu0 0.0
        %1523 = vmatprep.subr.mxu0 0.0
        %1524 = vmatpush1.msra.mxu0 0.0
        %1525 = vmatprep.subr.mxu0 0.0
        %1526 = vmatpush1.msra.mxu0 0.0
        %1527 = vmatprep.subr.mxu0 0.0
        %1528 = vmatpush1.msra.mxu0 0.0
        %1529 = vmatprep.subr.mxu0 0.0
        %1530 = vmatpush1.msra.mxu0 0.0
        %1531 = vmatprep.mubr.f32.mxu0 0.0
        %1532 = vmatmul.mubr.f32.gmra.mrb[0].mxu0 %v1465
        %v1533 = vpop.f32.mrb[0].mxu0
        %v1534 = vadd.f32 0.0, %v1533
        %v1535 = vpop.f32.mrb[0].mxu0
        %1536 = vdwg.mxu0
        %v1537 = vadd.f32 %v1460, %v1534
        %v1538 = vld [vmem:[#allocation2 + $0x10] sm:$0xff]
        %v1539 = vld [vmem:[%s3 + $0xe0] sm:$0xff]
        %v1540 = vld [vmem:[%s3 + $0xe8] sm:$0xff]
        %v1542 = vsel %vm467, %v1538, 0
        %1544 = vmatprep.subr.mxu0 0.0
        %1545 = vmatpush1.msra.mxu0 %v1539
        %1546 = vmatprep.subr.mxu0 0.0
        %1547 = vmatpush1.msra.mxu0 %v1540
        %1548 = vmatprep.subr.mxu0 0.0
        %1549 = vmatpush1.msra.mxu0 0.0
        %1550 = vmatprep.subr.mxu0 0.0
        %1551 = vmatpush1.msra.mxu0 0.0
        %1552 = vmatprep.subr.mxu0 0.0
        %1553 = vmatpush1.msra.mxu0 0.0
        %1554 = vmatprep.subr.mxu0 0.0
        %1555 = vmatpush1.msra.mxu0 0.0
        %1556 = vmatprep.subr.mxu0 0.0
        %1557 = vmatpush1.msra.mxu0 0.0
        %1558 = vmatprep.subr.mxu0 0.0
        %1559 = vmatpush1.msra.mxu0 0.0
        %1560 = vmatprep.subr.mxu0 0.0
        %1561 = vmatpush1.msra.mxu0 0.0
        %1562 = vmatprep.subr.mxu0 0.0
        %1563 = vmatpush1.msra.mxu0 0.0
        %1564 = vmatprep.subr.mxu0 0.0
        %1565 = vmatpush1.msra.mxu0 0.0
        %1566 = vmatprep.subr.mxu0 0.0
        %1567 = vmatpush1.msra.mxu0 0.0
        %1568 = vmatprep.subr.mxu0 0.0
        %1569 = vmatpush1.msra.mxu0 0.0
        %1570 = vmatprep.subr.mxu0 0.0
        %1571 = vmatpush1.msra.mxu0 0.0
        %1572 = vmatprep.subr.mxu0 0.0
        %1573 = vmatpush1.msra.mxu0 0.0
        %1574 = vmatprep.subr.mxu0 0.0
        %1575 = vmatpush1.msra.mxu0 0.0
        %1576 = vmatprep.subr.mxu0 0.0
        %1577 = vmatpush1.msra.mxu0 0.0
        %1578 = vmatprep.subr.mxu0 0.0
        %1579 = vmatpush1.msra.mxu0 0.0
        %1580 = vmatprep.subr.mxu0 0.0
        %1581 = vmatpush1.msra.mxu0 0.0
        %1582 = vmatprep.subr.mxu0 0.0
        %1583 = vmatpush1.msra.mxu0 0.0
        %1584 = vmatprep.subr.mxu0 0.0
        %1585 = vmatpush1.msra.mxu0 0.0
        %1586 = vmatprep.subr.mxu0 0.0
        %1587 = vmatpush1.msra.mxu0 0.0
        %1588 = vmatprep.subr.mxu0 0.0
        %1589 = vmatpush1.msra.mxu0 0.0
        %1590 = vmatprep.subr.mxu0 0.0
        %1591 = vmatpush1.msra.mxu0 0.0
        %1592 = vmatprep.subr.mxu0 0.0
        %1593 = vmatpush1.msra.mxu0 0.0
        %1594 = vmatprep.subr.mxu0 0.0
        %1595 = vmatpush1.msra.mxu0 0.0
        %1596 = vmatprep.subr.mxu0 0.0
        %1597 = vmatpush1.msra.mxu0 0.0
        %1598 = vmatprep.subr.mxu0 0.0
        %1599 = vmatpush1.msra.mxu0 0.0
        %1600 = vmatprep.subr.mxu0 0.0
        %1601 = vmatpush1.msra.mxu0 0.0
        %1602 = vmatprep.subr.mxu0 0.0
        %1603 = vmatpush1.msra.mxu0 0.0
        %1604 = vmatprep.subr.mxu0 0.0
        %1605 = vmatpush1.msra.mxu0 0.0
        %1606 = vmatprep.subr.mxu0 0.0
        %1607 = vmatpush1.msra.mxu0 0.0
        %1608 = vmatprep.mubr.f32.mxu0 0.0
        %1609 = vmatmul.mubr.f32.gmra.mrb[0].mxu0 %v1542
        %v1610 = vpop.f32.mrb[0].mxu0
        %v1611 = vadd.f32 0.0, %v1610
        %v1612 = vpop.f32.mrb[0].mxu0
        %1613 = vdwg.mxu0
        %v1614 = vadd.f32 %v1537, %v1611
        %v1615 = vld [vmem:[#allocation2 + $0x12] sm:$0xff]
        %v1616 = vld [vmem:[%s3 + $0xf0] sm:$0xff]
        %v1617 = vld [vmem:[%s3 + $0xf8] sm:$0xff]
        %v1619 = vsel %vm467, %v1615, 0
        %1621 = vmatprep.subr.mxu0 0.0
        %1622 = vmatpush1.msra.mxu0 %v1616
        %1623 = vmatprep.subr.mxu0 0.0
        %1624 = vmatpush1.msra.mxu0 %v1617
        %1625 = vmatprep.subr.mxu0 0.0
        %1626 = vmatpush1.msra.mxu0 0.0
        %1627 = vmatprep.subr.mxu0 0.0
        %1628 = vmatpush1.msra.mxu0 0.0
        %1629 = vmatprep.subr.mxu0 0.0
        %1630 = vmatpush1.msra.mxu0 0.0
        %1631 = vmatprep.subr.mxu0 0.0
        %1632 = vmatpush1.msra.mxu0 0.0
        %1633 = vmatprep.subr.mxu0 0.0
        %1634 = vmatpush1.msra.mxu0 0.0
        %1635 = vmatprep.subr.mxu0 0.0
        %1636 = vmatpush1.msra.mxu0 0.0
        %1637 = vmatprep.subr.mxu0 0.0
        %1638 = vmatpush1.msra.mxu0 0.0
        %1639 = vmatprep.subr.mxu0 0.0
        %1640 = vmatpush1.msra.mxu0 0.0
        %1641 = vmatprep.subr.mxu0 0.0
        %1642 = vmatpush1.msra.mxu0 0.0
        %1643 = vmatprep.subr.mxu0 0.0
        %1644 = vmatpush1.msra.mxu0 0.0
        %1645 = vmatprep.subr.mxu0 0.0
        %1646 = vmatpush1.msra.mxu0 0.0
        %1647 = vmatprep.subr.mxu0 0.0
        %1648 = vmatpush1.msra.mxu0 0.0
        %1649 = vmatprep.subr.mxu0 0.0
        %1650 = vmatpush1.msra.mxu0 0.0
        %1651 = vmatprep.subr.mxu0 0.0
        %1652 = vmatpush1.msra.mxu0 0.0
        %1653 = vmatprep.subr.mxu0 0.0
        %1654 = vmatpush1.msra.mxu0 0.0
        %1655 = vmatprep.subr.mxu0 0.0
        %1656 = vmatpush1.msra.mxu0 0.0
        %1657 = vmatprep.subr.mxu0 0.0
        %1658 = vmatpush1.msra.mxu0 0.0
        %1659 = vmatprep.subr.mxu0 0.0
        %1660 = vmatpush1.msra.mxu0 0.0
        %1661 = vmatprep.subr.mxu0 0.0
        %1662 = vmatpush1.msra.mxu0 0.0
        %1663 = vmatprep.subr.mxu0 0.0
        %1664 = vmatpush1.msra.mxu0 0.0
        %1665 = vmatprep.subr.mxu0 0.0
        %1666 = vmatpush1.msra.mxu0 0.0
        %1667 = vmatprep.subr.mxu0 0.0
        %1668 = vmatpush1.msra.mxu0 0.0
        %1669 = vmatprep.subr.mxu0 0.0
        %1670 = vmatpush1.msra.mxu0 0.0
        %1671 = vmatprep.subr.mxu0 0.0
        %1672 = vmatpush1.msra.mxu0 0.0
        %1673 = vmatprep.subr.mxu0 0.0
        %1674 = vmatpush1.msra.mxu0 0.0
        %1675 = vmatprep.subr.mxu0 0.0
        %1676 = vmatpush1.msra.mxu0 0.0
        %1677 = vmatprep.subr.mxu0 0.0
        %1678 = vmatpush1.msra.mxu0 0.0
        %1679 = vmatprep.subr.mxu0 0.0
        %1680 = vmatpush1.msra.mxu0 0.0
        %1681 = vmatprep.subr.mxu0 0.0
        %1682 = vmatpush1.msra.mxu0 0.0
        %1683 = vmatprep.subr.mxu0 0.0
        %1684 = vmatpush1.msra.mxu0 0.0
        %1685 = vmatprep.mubr.f32.mxu0 0.0
        %1686 = vmatmul.mubr.f32.gmra.mrb[0].mxu0 %v1619
        %v1687 = vpop.f32.mrb[0].mxu0
        %v1688 = vadd.f32 0.0, %v1687
        %v1689 = vpop.f32.mrb[0].mxu0
        %1690 = vdwg.mxu0
        %v1691 = vadd.f32 %v1614, %v1688
        %v1692 = vld [vmem:[#allocation2 + $0x13] sm:$0xff]
        %v1693 = vld [vmem:[%s3 + $0x100] sm:$0xff]
        %v1694 = vld [vmem:[%s3 + $0x108] sm:$0xff]
        %v1696 = vsel %vm467, %v1692, 0
        %1698 = vmatprep.subr.mxu0 0.0
        %1699 = vmatpush1.msra.mxu0 %v1693
        %1700 = vmatprep.subr.mxu0 0.0
        %1701 = vmatpush1.msra.mxu0 %v1694
        %1702 = vmatprep.subr.mxu0 0.0
        %1703 = vmatpush1.msra.mxu0 0.0
        %1704 = vmatprep.subr.mxu0 0.0
        %1705 = vmatpush1.msra.mxu0 0.0
        %1706 = vmatprep.subr.mxu0 0.0
        %1707 = vmatpush1.msra.mxu0 0.0
        %1708 = vmatprep.subr.mxu0 0.0
        %1709 = vmatpush1.msra.mxu0 0.0
        %1710 = vmatprep.subr.mxu0 0.0
        %1711 = vmatpush1.msra.mxu0 0.0
        %1712 = vmatprep.subr.mxu0 0.0
        %1713 = vmatpush1.msra.mxu0 0.0
        %1714 = vmatprep.subr.mxu0 0.0
        %1715 = vmatpush1.msra.mxu0 0.0
        %1716 = vmatprep.subr.mxu0 0.0
        %1717 = vmatpush1.msra.mxu0 0.0
        %1718 = vmatprep.subr.mxu0 0.0
        %1719 = vmatpush1.msra.mxu0 0.0
        %1720 = vmatprep.subr.mxu0 0.0
        %1721 = vmatpush1.msra.mxu0 0.0
        %1722 = vmatprep.subr.mxu0 0.0
        %1723 = vmatpush1.msra.mxu0 0.0
        %1724 = vmatprep.subr.mxu0 0.0
        %1725 = vmatpush1.msra.mxu0 0.0
        %1726 = vmatprep.subr.mxu0 0.0
        %1727 = vmatpush1.msra.mxu0 0.0
        %1728 = vmatprep.subr.mxu0 0.0
        %1729 = vmatpush1.msra.mxu0 0.0
        %1730 = vmatprep.subr.mxu0 0.0
        %1731 = vmatpush1.msra.mxu0 0.0
        %1732 = vmatprep.subr.mxu0 0.0
        %1733 = vmatpush1.msra.mxu0 0.0
        %1734 = vmatprep.subr.mxu0 0.0
        %1735 = vmatpush1.msra.mxu0 0.0
        %1736 = vmatprep.subr.mxu0 0.0
        %1737 = vmatpush1.msra.mxu0 0.0
        %1738 = vmatprep.subr.mxu0 0.0
        %1739 = vmatpush1.msra.mxu0 0.0
        %1740 = vmatprep.subr.mxu0 0.0
        %1741 = vmatpush1.msra.mxu0 0.0
        %1742 = vmatprep.subr.mxu0 0.0
        %1743 = vmatpush1.msra.mxu0 0.0
        %1744 = vmatprep.subr.mxu0 0.0
        %1745 = vmatpush1.msra.mxu0 0.0
        %1746 = vmatprep.subr.mxu0 0.0
        %1747 = vmatpush1.msra.mxu0 0.0
        %1748 = vmatprep.subr.mxu0 0.0
        %1749 = vmatpush1.msra.mxu0 0.0
        %1750 = vmatprep.subr.mxu0 0.0
        %1751 = vmatpush1.msra.mxu0 0.0
        %1752 = vmatprep.subr.mxu0 0.0
        %1753 = vmatpush1.msra.mxu0 0.0
        %1754 = vmatprep.subr.mxu0 0.0
        %1755 = vmatpush1.msra.mxu0 0.0
        %1756 = vmatprep.subr.mxu0 0.0
        %1757 = vmatpush1.msra.mxu0 0.0
        %1758 = vmatprep.subr.mxu0 0.0
        %1759 = vmatpush1.msra.mxu0 0.0
        %1760 = vmatprep.subr.mxu0 0.0
        %1761 = vmatpush1.msra.mxu0 0.0
        %1762 = vmatprep.mubr.f32.mxu0 0.0
        %1763 = vmatmul.mubr.f32.gmra.mrb[0].mxu0 %v1696
        %v1764 = vpop.f32.mrb[0].mxu0
        %v1765 = vadd.f32 0.0, %v1764
        %v1766 = vpop.f32.mrb[0].mxu0
        %1767 = vdwg.mxu0
        %v1768 = vadd.f32 %v1691, %v1765
        %v1769 = vld [vmem:[#allocation2 + $0x14] sm:$0xff]
        %v1770 = vld [vmem:[%s3 + $0x110] sm:$0xff]
        %v1771 = vld [vmem:[%s3 + $0x118] sm:$0xff]
        %v1773 = vsel %vm467, %v1769, 0
        %1775 = vmatprep.subr.mxu0 0.0
        %1776 = vmatpush1.msra.mxu0 %v1770
        %1777 = vmatprep.subr.mxu0 0.0
        %1778 = vmatpush1.msra.mxu0 %v1771
        %1779 = vmatprep.subr.mxu0 0.0
        %1780 = vmatpush1.msra.mxu0 0.0
        %1781 = vmatprep.subr.mxu0 0.0
        %1782 = vmatpush1.msra.mxu0 0.0
        %1783 = vmatprep.subr.mxu0 0.0
        %1784 = vmatpush1.msra.mxu0 0.0
        %1785 = vmatprep.subr.mxu0 0.0
        %1786 = vmatpush1.msra.mxu0 0.0
        %1787 = vmatprep.subr.mxu0 0.0
        %1788 = vmatpush1.msra.mxu0 0.0
        %1789 = vmatprep.subr.mxu0 0.0
        %1790 = vmatpush1.msra.mxu0 0.0
        %1791 = vmatprep.subr.mxu0 0.0
        %1792 = vmatpush1.msra.mxu0 0.0
        %1793 = vmatprep.subr.mxu0 0.0
        %1794 = vmatpush1.msra.mxu0 0.0
        %1795 = vmatprep.subr.mxu0 0.0
        %1796 = vmatpush1.msra.mxu0 0.0
        %1797 = vmatprep.subr.mxu0 0.0
        %1798 = vmatpush1.msra.mxu0 0.0
        %1799 = vmatprep.subr.mxu0 0.0
        %1800 = vmatpush1.msra.mxu0 0.0
        %1801 = vmatprep.subr.mxu0 0.0
        %1802 = vmatpush1.msra.mxu0 0.0
        %1803 = vmatprep.subr.mxu0 0.0
        %1804 = vmatpush1.msra.mxu0 0.0
        %1805 = vmatprep.subr.mxu0 0.0
        %1806 = vmatpush1.msra.mxu0 0.0
        %1807 = vmatprep.subr.mxu0 0.0
        %1808 = vmatpush1.msra.mxu0 0.0
        %1809 = vmatprep.subr.mxu0 0.0
        %1810 = vmatpush1.msra.mxu0 0.0
        %1811 = vmatprep.subr.mxu0 0.0
        %1812 = vmatpush1.msra.mxu0 0.0
        %1813 = vmatprep.subr.mxu0 0.0
        %1814 = vmatpush1.msra.mxu0 0.0
        %1815 = vmatprep.subr.mxu0 0.0
        %1816 = vmatpush1.msra.mxu0 0.0
        %1817 = vmatprep.subr.mxu0 0.0
        %1818 = vmatpush1.msra.mxu0 0.0
        %1819 = vmatprep.subr.mxu0 0.0
        %1820 = vmatpush1.msra.mxu0 0.0
        %1821 = vmatprep.subr.mxu0 0.0
        %1822 = vmatpush1.msra.mxu0 0.0
        %1823 = vmatprep.subr.mxu0 0.0
        %1824 = vmatpush1.msra.mxu0 0.0
        %1825 = vmatprep.subr.mxu0 0.0
        %1826 = vmatpush1.msra.mxu0 0.0
        %1827 = vmatprep.subr.mxu0 0.0
        %1828 = vmatpush1.msra.mxu0 0.0
        %1829 = vmatprep.subr.mxu0 0.0
        %1830 = vmatpush1.msra.mxu0 0.0
        %1831 = vmatprep.subr.mxu0 0.0
        %1832 = vmatpush1.msra.mxu0 0.0
        %1833 = vmatprep.subr.mxu0 0.0
        %1834 = vmatpush1.msra.mxu0 0.0
        %1835 = vmatprep.subr.mxu0 0.0
        %1836 = vmatpush1.msra.mxu0 0.0
        %1837 = vmatprep.subr.mxu0 0.0
        %1838 = vmatpush1.msra.mxu0 0.0
        %1839 = vmatprep.mubr.f32.mxu0 0.0
        %1840 = vmatmul.mubr.f32.gmra.mrb[0].mxu0 %v1773
        %v1841 = vpop.f32.mrb[0].mxu0
        %v1842 = vadd.f32 0.0, %v1841
        %v1843 = vpop.f32.mrb[0].mxu0
        %1844 = vdwg.mxu0
        %v1845 = vadd.f32 %v1768, %v1842
        %v1846 = vld [vmem:[#allocation2 + $0x15] sm:$0xff]
        %v1847 = vld [vmem:[%s3 + $0x120] sm:$0xff]
        %v1848 = vld [vmem:[%s3 + $0x128] sm:$0xff]
        %v1850 = vsel %vm467, %v1846, 0
        %1852 = vmatprep.subr.mxu0 0.0
        %1853 = vmatpush1.msra.mxu0 %v1847
        %1854 = vmatprep.subr.mxu0 0.0
        %1855 = vmatpush1.msra.mxu0 %v1848
        %1856 = vmatprep.subr.mxu0 0.0
        %1857 = vmatpush1.msra.mxu0 0.0
        %1858 = vmatprep.subr.mxu0 0.0
        %1859 = vmatpush1.msra.mxu0 0.0
        %1860 = vmatprep.subr.mxu0 0.0
        %1861 = vmatpush1.msra.mxu0 0.0
        %1862 = vmatprep.subr.mxu0 0.0
        %1863 = vmatpush1.msra.mxu0 0.0
        %1864 = vmatprep.subr.mxu0 0.0
        %1865 = vmatpush1.msra.mxu0 0.0
        %1866 = vmatprep.subr.mxu0 0.0
        %1867 = vmatpush1.msra.mxu0 0.0
        %1868 = vmatprep.subr.mxu0 0.0
        %1869 = vmatpush1.msra.mxu0 0.0
        %1870 = vmatprep.subr.mxu0 0.0
        %1871 = vmatpush1.msra.mxu0 0.0
        %1872 = vmatprep.subr.mxu0 0.0
        %1873 = vmatpush1.msra.mxu0 0.0
        %1874 = vmatprep.subr.mxu0 0.0
        %1875 = vmatpush1.msra.mxu0 0.0
        %1876 = vmatprep.subr.mxu0 0.0
        %1877 = vmatpush1.msra.mxu0 0.0
        %1878 = vmatprep.subr.mxu0 0.0
        %1879 = vmatpush1.msra.mxu0 0.0
        %1880 = vmatprep.subr.mxu0 0.0
        %1881 = vmatpush1.msra.mxu0 0.0
        %1882 = vmatprep.subr.mxu0 0.0
        %1883 = vmatpush1.msra.mxu0 0.0
        %1884 = vmatprep.subr.mxu0 0.0
        %1885 = vmatpush1.msra.mxu0 0.0
        %1886 = vmatprep.subr.mxu0 0.0
        %1887 = vmatpush1.msra.mxu0 0.0
        %1888 = vmatprep.subr.mxu0 0.0
        %1889 = vmatpush1.msra.mxu0 0.0
        %1890 = vmatprep.subr.mxu0 0.0
        %1891 = vmatpush1.msra.mxu0 0.0
        %1892 = vmatprep.subr.mxu0 0.0
        %1893 = vmatpush1.msra.mxu0 0.0
        %1894 = vmatprep.subr.mxu0 0.0
        %1895 = vmatpush1.msra.mxu0 0.0
        %1896 = vmatprep.subr.mxu0 0.0
        %1897 = vmatpush1.msra.mxu0 0.0
        %1898 = vmatprep.subr.mxu0 0.0
        %1899 = vmatpush1.msra.mxu0 0.0
        %1900 = vmatprep.subr.mxu0 0.0
        %1901 = vmatpush1.msra.mxu0 0.0
        %1902 = vmatprep.subr.mxu0 0.0
        %1903 = vmatpush1.msra.mxu0 0.0
        %1904 = vmatprep.subr.mxu0 0.0
        %1905 = vmatpush1.msra.mxu0 0.0
        %1906 = vmatprep.subr.mxu0 0.0
        %1907 = vmatpush1.msra.mxu0 0.0
        %1908 = vmatprep.subr.mxu0 0.0
        %1909 = vmatpush1.msra.mxu0 0.0
        %1910 = vmatprep.subr.mxu0 0.0
        %1911 = vmatpush1.msra.mxu0 0.0
        %1912 = vmatprep.subr.mxu0 0.0
        %1913 = vmatpush1.msra.mxu0 0.0
        %1914 = vmatprep.subr.mxu0 0.0
        %1915 = vmatpush1.msra.mxu0 0.0
        %1916 = vmatprep.mubr.f32.mxu0 0.0
        %1917 = vmatmul.mubr.f32.gmra.mrb[0].mxu0 %v1850
        %v1918 = vpop.f32.mrb[0].mxu0
        %v1919 = vadd.f32 0.0, %v1918
        %v1920 = vpop.f32.mrb[0].mxu0
        %1921 = vdwg.mxu0
        %v1922 = vadd.f32 %v1845, %v1919
        %v1923 = vld [vmem:[#allocation2 + $0x16] sm:$0xff]
        %v1924 = vld [vmem:[%s3 + $0x130] sm:$0xff]
        %v1925 = vld [vmem:[%s3 + $0x138] sm:$0xff]
        %v1927 = vsel %vm467, %v1923, 0
        %1929 = vmatprep.subr.mxu0 0.0
        %1930 = vmatpush1.msra.mxu0 %v1924
        %1931 = vmatprep.subr.mxu0 0.0
        %1932 = vmatpush1.msra.mxu0 %v1925
        %1933 = vmatprep.subr.mxu0 0.0
        %1934 = vmatpush1.msra.mxu0 0.0
        %1935 = vmatprep.subr.mxu0 0.0
        %1936 = vmatpush1.msra.mxu0 0.0
        %1937 = vmatprep.subr.mxu0 0.0
        %1938 = vmatpush1.msra.mxu0 0.0
        %1939 = vmatprep.subr.mxu0 0.0
        %1940 = vmatpush1.msra.mxu0 0.0
        %1941 = vmatprep.subr.mxu0 0.0
        %1942 = vmatpush1.msra.mxu0 0.0
        %1943 = vmatprep.subr.mxu0 0.0
        %1944 = vmatpush1.msra.mxu0 0.0
        %1945 = vmatprep.subr.mxu0 0.0
        %1946 = vmatpush1.msra.mxu0 0.0
        %1947 = vmatprep.subr.mxu0 0.0
        %1948 = vmatpush1.msra.mxu0 0.0
        %1949 = vmatprep.subr.mxu0 0.0
        %1950 = vmatpush1.msra.mxu0 0.0
        %1951 = vmatprep.subr.mxu0 0.0
        %1952 = vmatpush1.msra.mxu0 0.0
        %1953 = vmatprep.subr.mxu0 0.0
        %1954 = vmatpush1.msra.mxu0 0.0
        %1955 = vmatprep.subr.mxu0 0.0
        %1956 = vmatpush1.msra.mxu0 0.0
        %1957 = vmatprep.subr.mxu0 0.0
        %1958 = vmatpush1.msra.mxu0 0.0
        %1959 = vmatprep.subr.mxu0 0.0
        %1960 = vmatpush1.msra.mxu0 0.0
        %1961 = vmatprep.subr.mxu0 0.0
        %1962 = vmatpush1.msra.mxu0 0.0
        %1963 = vmatprep.subr.mxu0 0.0
        %1964 = vmatpush1.msra.mxu0 0.0
        %1965 = vmatprep.subr.mxu0 0.0
        %1966 = vmatpush1.msra.mxu0 0.0
        %1967 = vmatprep.subr.mxu0 0.0
        %1968 = vmatpush1.msra.mxu0 0.0
        %1969 = vmatprep.subr.mxu0 0.0
        %1970 = vmatpush1.msra.mxu0 0.0
        %1971 = vmatprep.subr.mxu0 0.0
        %1972 = vmatpush1.msra.mxu0 0.0
        %1973 = vmatprep.subr.mxu0 0.0
        %1974 = vmatpush1.msra.mxu0 0.0
        %1975 = vmatprep.subr.mxu0 0.0
        %1976 = vmatpush1.msra.mxu0 0.0
        %1977 = vmatprep.subr.mxu0 0.0
        %1978 = vmatpush1.msra.mxu0 0.0
        %1979 = vmatprep.subr.mxu0 0.0
        %1980 = vmatpush1.msra.mxu0 0.0
        %1981 = vmatprep.subr.mxu0 0.0
        %1982 = vmatpush1.msra.mxu0 0.0
        %1983 = vmatprep.subr.mxu0 0.0
        %1984 = vmatpush1.msra.mxu0 0.0
        %1985 = vmatprep.subr.mxu0 0.0
        %1986 = vmatpush1.msra.mxu0 0.0
        %1987 = vmatprep.subr.mxu0 0.0
        %1988 = vmatpush1.msra.mxu0 0.0
        %1989 = vmatprep.subr.mxu0 0.0
        %1990 = vmatpush1.msra.mxu0 0.0
        %1991 = vmatprep.subr.mxu0 0.0
        %1992 = vmatpush1.msra.mxu0 0.0
        %1993 = vmatprep.mubr.f32.mxu0 0.0
        %1994 = vmatmul.mubr.f32.gmra.mrb[0].mxu0 %v1927
        %v1995 = vpop.f32.mrb[0].mxu0
        %v1996 = vadd.f32 0.0, %v1995
        %v1997 = vpop.f32.mrb[0].mxu0
        %1998 = vdwg.mxu0
        %v1999 = vadd.f32 %v1922, %v1996
        %v2000 = vld [vmem:[#allocation2 + $0x18] sm:$0xff]
        %v2001 = vld [vmem:[%s3 + $0x140] sm:$0xff]
        %v2002 = vld [vmem:[%s3 + $0x148] sm:$0xff]
        %v2004 = vsel %vm467, %v2000, 0
        %2006 = vmatprep.subr.mxu0 0.0
        %2007 = vmatpush1.msra.mxu0 %v2001
        %2008 = vmatprep.subr.mxu0 0.0
        %2009 = vmatpush1.msra.mxu0 %v2002
        %2010 = vmatprep.subr.mxu0 0.0
        %2011 = vmatpush1.msra.mxu0 0.0
        %2012 = vmatprep.subr.mxu0 0.0
        %2013 = vmatpush1.msra.mxu0 0.0
        %2014 = vmatprep.subr.mxu0 0.0
        %2015 = vmatpush1.msra.mxu0 0.0
        %2016 = vmatprep.subr.mxu0 0.0
        %2017 = vmatpush1.msra.mxu0 0.0
        %2018 = vmatprep.subr.mxu0 0.0
        %2019 = vmatpush1.msra.mxu0 0.0
        %2020 = vmatprep.subr.mxu0 0.0
        %2021 = vmatpush1.msra.mxu0 0.0
        %2022 = vmatprep.subr.mxu0 0.0
        %2023 = vmatpush1.msra.mxu0 0.0
        %2024 = vmatprep.subr.mxu0 0.0
        %2025 = vmatpush1.msra.mxu0 0.0
        %2026 = vmatprep.subr.mxu0 0.0
        %2027 = vmatpush1.msra.mxu0 0.0
        %2028 = vmatprep.subr.mxu0 0.0
        %2029 = vmatpush1.msra.mxu0 0.0
        %2030 = vmatprep.subr.mxu0 0.0
        %2031 = vmatpush1.msra.mxu0 0.0
        %2032 = vmatprep.subr.mxu0 0.0
        %2033 = vmatpush1.msra.mxu0 0.0
        %2034 = vmatprep.subr.mxu0 0.0
        %2035 = vmatpush1.msra.mxu0 0.0
        %2036 = vmatprep.subr.mxu0 0.0
        %2037 = vmatpush1.msra.mxu0 0.0
        %2038 = vmatprep.subr.mxu0 0.0
        %2039 = vmatpush1.msra.mxu0 0.0
        %2040 = vmatprep.subr.mxu0 0.0
        %2041 = vmatpush1.msra.mxu0 0.0
        %2042 = vmatprep.subr.mxu0 0.0
        %2043 = vmatpush1.msra.mxu0 0.0
        %2044 = vmatprep.subr.mxu0 0.0
        %2045 = vmatpush1.msra.mxu0 0.0
        %2046 = vmatprep.subr.mxu0 0.0
        %2047 = vmatpush1.msra.mxu0 0.0
        %2048 = vmatprep.subr.mxu0 0.0
        %2049 = vmatpush1.msra.mxu0 0.0
        %2050 = vmatprep.subr.mxu0 0.0
        %2051 = vmatpush1.msra.mxu0 0.0
        %2052 = vmatprep.subr.mxu0 0.0
        %2053 = vmatpush1.msra.mxu0 0.0
        %2054 = vmatprep.subr.mxu0 0.0
        %2055 = vmatpush1.msra.mxu0 0.0
        %2056 = vmatprep.subr.mxu0 0.0
        %2057 = vmatpush1.msra.mxu0 0.0
        %2058 = vmatprep.subr.mxu0 0.0
        %2059 = vmatpush1.msra.mxu0 0.0
        %2060 = vmatprep.subr.mxu0 0.0
        %2061 = vmatpush1.msra.mxu0 0.0
        %2062 = vmatprep.subr.mxu0 0.0
        %2063 = vmatpush1.msra.mxu0 0.0
        %2064 = vmatprep.subr.mxu0 0.0
        %2065 = vmatpush1.msra.mxu0 0.0
        %2066 = vmatprep.subr.mxu0 0.0
        %2067 = vmatpush1.msra.mxu0 0.0
        %2068 = vmatprep.subr.mxu0 0.0
        %2069 = vmatpush1.msra.mxu0 0.0
        %2070 = vmatprep.mubr.f32.mxu0 0.0
        %2071 = vmatmul.mubr.f32.gmra.mrb[0].mxu0 %v2004
        %v2072 = vpop.f32.mrb[0].mxu0
        %v2073 = vadd.f32 0.0, %v2072
        %v2074 = vpop.f32.mrb[0].mxu0
        %2075 = vdwg.mxu0
        %v2076 = vadd.f32 %v1999, %v2073
        %v2077 = vld [vmem:[#allocation2 + $0x19] sm:$0xff]
        %v2078 = vld [vmem:[%s3 + $0x150] sm:$0xff]
        %v2079 = vld [vmem:[%s3 + $0x158] sm:$0xff]
        %v2081 = vsel %vm467, %v2077, 0
        %2083 = vmatprep.subr.mxu0 0.0
        %2084 = vmatpush1.msra.mxu0 %v2078
        %2085 = vmatprep.subr.mxu0 0.0
        %2086 = vmatpush1.msra.mxu0 %v2079
        %2087 = vmatprep.subr.mxu0 0.0
        %2088 = vmatpush1.msra.mxu0 0.0
        %2089 = vmatprep.subr.mxu0 0.0
        %2090 = vmatpush1.msra.mxu0 0.0
        %2091 = vmatprep.subr.mxu0 0.0
        %2092 = vmatpush1.msra.mxu0 0.0
        %2093 = vmatprep.subr.mxu0 0.0
        %2094 = vmatpush1.msra.mxu0 0.0
        %2095 = vmatprep.subr.mxu0 0.0
        %2096 = vmatpush1.msra.mxu0 0.0
        %2097 = vmatprep.subr.mxu0 0.0
        %2098 = vmatpush1.msra.mxu0 0.0
        %2099 = vmatprep.subr.mxu0 0.0
        %2100 = vmatpush1.msra.mxu0 0.0
        %2101 = vmatprep.subr.mxu0 0.0
        %2102 = vmatpush1.msra.mxu0 0.0
        %2103 = vmatprep.subr.mxu0 0.0
        %2104 = vmatpush1.msra.mxu0 0.0
        %2105 = vmatprep.subr.mxu0 0.0
        %2106 = vmatpush1.msra.mxu0 0.0
        %2107 = vmatprep.subr.mxu0 0.0
        %2108 = vmatpush1.msra.mxu0 0.0
        %2109 = vmatprep.subr.mxu0 0.0
        %2110 = vmatpush1.msra.mxu0 0.0
        %2111 = vmatprep.subr.mxu0 0.0
        %2112 = vmatpush1.msra.mxu0 0.0
        %2113 = vmatprep.subr.mxu0 0.0
        %2114 = vmatpush1.msra.mxu0 0.0
        %2115 = vmatprep.subr.mxu0 0.0
        %2116 = vmatpush1.msra.mxu0 0.0
        %2117 = vmatprep.subr.mxu0 0.0
        %2118 = vmatpush1.msra.mxu0 0.0
        %2119 = vmatprep.subr.mxu0 0.0
        %2120 = vmatpush1.msra.mxu0 0.0
        %2121 = vmatprep.subr.mxu0 0.0
        %2122 = vmatpush1.msra.mxu0 0.0
        %2123 = vmatprep.subr.mxu0 0.0
        %2124 = vmatpush1.msra.mxu0 0.0
        %2125 = vmatprep.subr.mxu0 0.0
        %2126 = vmatpush1.msra.mxu0 0.0
        %2127 = vmatprep.subr.mxu0 0.0
        %2128 = vmatpush1.msra.mxu0 0.0
        %2129 = vmatprep.subr.mxu0 0.0
        %2130 = vmatpush1.msra.mxu0 0.0
        %2131 = vmatprep.subr.mxu0 0.0
        %2132 = vmatpush1.msra.mxu0 0.0
        %2133 = vmatprep.subr.mxu0 0.0
        %2134 = vmatpush1.msra.mxu0 0.0
        %2135 = vmatprep.subr.mxu0 0.0
        %2136 = vmatpush1.msra.mxu0 0.0
        %2137 = vmatprep.subr.mxu0 0.0
        %2138 = vmatpush1.msra.mxu0 0.0
        %2139 = vmatprep.subr.mxu0 0.0
        %2140 = vmatpush1.msra.mxu0 0.0
        %2141 = vmatprep.subr.mxu0 0.0
        %2142 = vmatpush1.msra.mxu0 0.0
        %2143 = vmatprep.subr.mxu0 0.0
        %2144 = vmatpush1.msra.mxu0 0.0
        %2145 = vmatprep.subr.mxu0 0.0
        %2146 = vmatpush1.msra.mxu0 0.0
        %2147 = vmatprep.mubr.f32.mxu0 0.0
        %2148 = vmatmul.mubr.f32.gmra.mrb[0].mxu0 %v2081
        %v2149 = vpop.f32.mrb[0].mxu0
        %v2150 = vadd.f32 0.0, %v2149
        %v2151 = vpop.f32.mrb[0].mxu0
        %2152 = vdwg.mxu0
        %v2153 = vadd.f32 %v2076, %v2150
        %v2154 = vld [vmem:[#allocation2 + $0x1a] sm:$0xff]
        %v2155 = vld [vmem:[%s3 + $0x160] sm:$0xff]
        %v2156 = vld [vmem:[%s3 + $0x168] sm:$0xff]
        %v2158 = vsel %vm467, %v2154, 0
        %2160 = vmatprep.subr.mxu0 0.0
        %2161 = vmatpush1.msra.mxu0 %v2155
        %2162 = vmatprep.subr.mxu0 0.0
        %2163 = vmatpush1.msra.mxu0 %v2156
        %2164 = vmatprep.subr.mxu0 0.0
        %2165 = vmatpush1.msra.mxu0 0.0
        %2166 = vmatprep.subr.mxu0 0.0
        %2167 = vmatpush1.msra.mxu0 0.0
        %2168 = vmatprep.subr.mxu0 0.0
        %2169 = vmatpush1.msra.mxu0 0.0
        %2170 = vmatprep.subr.mxu0 0.0
        %2171 = vmatpush1.msra.mxu0 0.0
        %2172 = vmatprep.subr.mxu0 0.0
        %2173 = vmatpush1.msra.mxu0 0.0
        %2174 = vmatprep.subr.mxu0 0.0
        %2175 = vmatpush1.msra.mxu0 0.0
        %2176 = vmatprep.subr.mxu0 0.0
        %2177 = vmatpush1.msra.mxu0 0.0
        %2178 = vmatprep.subr.mxu0 0.0
        %2179 = vmatpush1.msra.mxu0 0.0
        %2180 = vmatprep.subr.mxu0 0.0
        %2181 = vmatpush1.msra.mxu0 0.0
        %2182 = vmatprep.subr.mxu0 0.0
        %2183 = vmatpush1.msra.mxu0 0.0
        %2184 = vmatprep.subr.mxu0 0.0
        %2185 = vmatpush1.msra.mxu0 0.0
        %2186 = vmatprep.subr.mxu0 0.0
        %2187 = vmatpush1.msra.mxu0 0.0
        %2188 = vmatprep.subr.mxu0 0.0
        %2189 = vmatpush1.msra.mxu0 0.0
        %2190 = vmatprep.subr.mxu0 0.0
        %2191 = vmatpush1.msra.mxu0 0.0
        %2192 = vmatprep.subr.mxu0 0.0
        %2193 = vmatpush1.msra.mxu0 0.0
        %2194 = vmatprep.subr.mxu0 0.0
        %2195 = vmatpush1.msra.mxu0 0.0
        %2196 = vmatprep.subr.mxu0 0.0
        %2197 = vmatpush1.msra.mxu0 0.0
        %2198 = vmatprep.subr.mxu0 0.0
        %2199 = vmatpush1.msra.mxu0 0.0
        %2200 = vmatprep.subr.mxu0 0.0
        %2201 = vmatpush1.msra.mxu0 0.0
        %2202 = vmatprep.subr.mxu0 0.0
        %2203 = vmatpush1.msra.mxu0 0.0
        %2204 = vmatprep.subr.mxu0 0.0
        %2205 = vmatpush1.msra.mxu0 0.0
        %2206 = vmatprep.subr.mxu0 0.0
        %2207 = vmatpush1.msra.mxu0 0.0
        %2208 = vmatprep.subr.mxu0 0.0
        %2209 = vmatpush1.msra.mxu0 0.0
        %2210 = vmatprep.subr.mxu0 0.0
        %2211 = vmatpush1.msra.mxu0 0.0
        %2212 = vmatprep.subr.mxu0 0.0
        %2213 = vmatpush1.msra.mxu0 0.0
        %2214 = vmatprep.subr.mxu0 0.0
        %2215 = vmatpush1.msra.mxu0 0.0
        %2216 = vmatprep.subr.mxu0 0.0
        %2217 = vmatpush1.msra.mxu0 0.0
        %2218 = vmatprep.subr.mxu0 0.0
        %2219 = vmatpush1.msra.mxu0 0.0
        %2220 = vmatprep.subr.mxu0 0.0
        %2221 = vmatpush1.msra.mxu0 0.0
        %2222 = vmatprep.subr.mxu0 0.0
        %2223 = vmatpush1.msra.mxu0 0.0
        %2224 = vmatprep.mubr.f32.mxu0 0.0
        %2225 = vmatmul.mubr.f32.gmra.mrb[0].mxu0 %v2158
        %v2226 = vpop.f32.mrb[0].mxu0
        %v2227 = vadd.f32 0.0, %v2226
        %v2228 = vpop.f32.mrb[0].mxu0
        %2229 = vdwg.mxu0
        %v2230 = vadd.f32 %v2153, %v2227
        %v2231 = vld [vmem:[#allocation2 + $0x1b] sm:$0xff]
        %v2232 = vld [vmem:[%s3 + $0x170] sm:$0xff]
        %v2233 = vld [vmem:[%s3 + $0x178] sm:$0xff]
        %v2235 = vsel %vm467, %v2231, 0
        %2237 = vmatprep.subr.mxu0 0.0
        %2238 = vmatpush1.msra.mxu0 %v2232
        %2239 = vmatprep.subr.mxu0 0.0
        %2240 = vmatpush1.msra.mxu0 %v2233
        %2241 = vmatprep.subr.mxu0 0.0
        %2242 = vmatpush1.msra.mxu0 0.0
        %2243 = vmatprep.subr.mxu0 0.0
        %2244 = vmatpush1.msra.mxu0 0.0
        %2245 = vmatprep.subr.mxu0 0.0
        %2246 = vmatpush1.msra.mxu0 0.0
        %2247 = vmatprep.subr.mxu0 0.0
        %2248 = vmatpush1.msra.mxu0 0.0
        %2249 = vmatprep.subr.mxu0 0.0
        %2250 = vmatpush1.msra.mxu0 0.0
        %2251 = vmatprep.subr.mxu0 0.0
        %2252 = vmatpush1.msra.mxu0 0.0
        %2253 = vmatprep.subr.mxu0 0.0
        %2254 = vmatpush1.msra.mxu0 0.0
        %2255 = vmatprep.subr.mxu0 0.0
        %2256 = vmatpush1.msra.mxu0 0.0
        %2257 = vmatprep.subr.mxu0 0.0
        %2258 = vmatpush1.msra.mxu0 0.0
        %2259 = vmatprep.subr.mxu0 0.0
        %2260 = vmatpush1.msra.mxu0 0.0
        %2261 = vmatprep.subr.mxu0 0.0
        %2262 = vmatpush1.msra.mxu0 0.0
        %2263 = vmatprep.subr.mxu0 0.0
        %2264 = vmatpush1.msra.mxu0 0.0
        %2265 = vmatprep.subr.mxu0 0.0
        %2266 = vmatpush1.msra.mxu0 0.0
        %2267 = vmatprep.subr.mxu0 0.0
        %2268 = vmatpush1.msra.mxu0 0.0
        %2269 = vmatprep.subr.mxu0 0.0
        %2270 = vmatpush1.msra.mxu0 0.0
        %2271 = vmatprep.subr.mxu0 0.0
        %2272 = vmatpush1.msra.mxu0 0.0
        %2273 = vmatprep.subr.mxu0 0.0
        %2274 = vmatpush1.msra.mxu0 0.0
        %2275 = vmatprep.subr.mxu0 0.0
        %2276 = vmatpush1.msra.mxu0 0.0
        %2277 = vmatprep.subr.mxu0 0.0
        %2278 = vmatpush1.msra.mxu0 0.0
        %2279 = vmatprep.subr.mxu0 0.0
        %2280 = vmatpush1.msra.mxu0 0.0
        %2281 = vmatprep.subr.mxu0 0.0
        %2282 = vmatpush1.msra.mxu0 0.0
        %2283 = vmatprep.subr.mxu0 0.0
        %2284 = vmatpush1.msra.mxu0 0.0
        %2285 = vmatprep.subr.mxu0 0.0
        %2286 = vmatpush1.msra.mxu0 0.0
        %2287 = vmatprep.subr.mxu0 0.0
        %2288 = vmatpush1.msra.mxu0 0.0
        %2289 = vmatprep.subr.mxu0 0.0
        %2290 = vmatpush1.msra.mxu0 0.0
        %2291 = vmatprep.subr.mxu0 0.0
        %2292 = vmatpush1.msra.mxu0 0.0
        %2293 = vmatprep.subr.mxu0 0.0
        %2294 = vmatpush1.msra.mxu0 0.0
        %2295 = vmatprep.subr.mxu0 0.0
        %2296 = vmatpush1.msra.mxu0 0.0
        %2297 = vmatprep.subr.mxu0 0.0
        %2298 = vmatpush1.msra.mxu0 0.0
        %2299 = vmatprep.subr.mxu0 0.0
        %2300 = vmatpush1.msra.mxu0 0.0
        %2301 = vmatprep.mubr.f32.mxu0 0.0
        %2302 = vmatmul.mubr.f32.gmra.mrb[0].mxu0 %v2235
        %v2303 = vpop.f32.mrb[0].mxu0
        %v2304 = vadd.f32 0.0, %v2303
        %v2305 = vpop.f32.mrb[0].mxu0
        %2306 = vdwg.mxu0
        %v2307 = vadd.f32 %v2230, %v2304
        %v2308 = vld [vmem:[#allocation2 + $0x1c] sm:$0xff]
        %v2309 = vld [vmem:[%s3 + $0x180] sm:$0xff]
        %v2310 = vld [vmem:[%s3 + $0x188] sm:$0xff]
        %v2312 = vsel %vm467, %v2308, 0
        %2314 = vmatprep.subr.mxu0 0.0
        %2315 = vmatpush1.msra.mxu0 %v2309
        %2316 = vmatprep.subr.mxu0 0.0
        %2317 = vmatpush1.msra.mxu0 %v2310
        %2318 = vmatprep.subr.mxu0 0.0
        %2319 = vmatpush1.msra.mxu0 0.0
        %2320 = vmatprep.subr.mxu0 0.0
        %2321 = vmatpush1.msra.mxu0 0.0
        %2322 = vmatprep.subr.mxu0 0.0
        %2323 = vmatpush1.msra.mxu0 0.0
        %2324 = vmatprep.subr.mxu0 0.0
        %2325 = vmatpush1.msra.mxu0 0.0
        %2326 = vmatprep.subr.mxu0 0.0
        %2327 = vmatpush1.msra.mxu0 0.0
        %2328 = vmatprep.subr.mxu0 0.0
        %2329 = vmatpush1.msra.mxu0 0.0
        %2330 = vmatprep.subr.mxu0 0.0
        %2331 = vmatpush1.msra.mxu0 0.0
        %2332 = vmatprep.subr.mxu0 0.0
        %2333 = vmatpush1.msra.mxu0 0.0
        %2334 = vmatprep.subr.mxu0 0.0
        %2335 = vmatpush1.msra.mxu0 0.0
        %2336 = vmatprep.subr.mxu0 0.0
        %2337 = vmatpush1.msra.mxu0 0.0
        %2338 = vmatprep.subr.mxu0 0.0
        %2339 = vmatpush1.msra.mxu0 0.0
        %2340 = vmatprep.subr.mxu0 0.0
        %2341 = vmatpush1.msra.mxu0 0.0
        %2342 = vmatprep.subr.mxu0 0.0
        %2343 = vmatpush1.msra.mxu0 0.0
        %2344 = vmatprep.subr.mxu0 0.0
        %2345 = vmatpush1.msra.mxu0 0.0
        %2346 = vmatprep.subr.mxu0 0.0
        %2347 = vmatpush1.msra.mxu0 0.0
        %2348 = vmatprep.subr.mxu0 0.0
        %2349 = vmatpush1.msra.mxu0 0.0
        %2350 = vmatprep.subr.mxu0 0.0
        %2351 = vmatpush1.msra.mxu0 0.0
        %2352 = vmatprep.subr.mxu0 0.0
        %2353 = vmatpush1.msra.mxu0 0.0
        %2354 = vmatprep.subr.mxu0 0.0
        %2355 = vmatpush1.msra.mxu0 0.0
        %2356 = vmatprep.subr.mxu0 0.0
        %2357 = vmatpush1.msra.mxu0 0.0
        %2358 = vmatprep.subr.mxu0 0.0
        %2359 = vmatpush1.msra.mxu0 0.0
        %2360 = vmatprep.subr.mxu0 0.0
        %2361 = vmatpush1.msra.mxu0 0.0
        %2362 = vmatprep.subr.mxu0 0.0
        %2363 = vmatpush1.msra.mxu0 0.0
        %2364 = vmatprep.subr.mxu0 0.0
        %2365 = vmatpush1.msra.mxu0 0.0
        %2366 = vmatprep.subr.mxu0 0.0
        %2367 = vmatpush1.msra.mxu0 0.0
        %2368 = vmatprep.subr.mxu0 0.0
        %2369 = vmatpush1.msra.mxu0 0.0
        %2370 = vmatprep.subr.mxu0 0.0
        %2371 = vmatpush1.msra.mxu0 0.0
        %2372 = vmatprep.subr.mxu0 0.0
        %2373 = vmatpush1.msra.mxu0 0.0
        %2374 = vmatprep.subr.mxu0 0.0
        %2375 = vmatpush1.msra.mxu0 0.0
        %2376 = vmatprep.subr.mxu0 0.0
        %2377 = vmatpush1.msra.mxu0 0.0
        %2378 = vmatprep.mubr.f32.mxu0 0.0
        %2379 = vmatmul.mubr.f32.gmra.mrb[0].mxu0 %v2312
        %v2380 = vpop.f32.mrb[0].mxu0
        %v2381 = vadd.f32 0.0, %v2380
        %v2382 = vpop.f32.mrb[0].mxu0
        %2383 = vdwg.mxu0
        %v2384 = vadd.f32 %v2307, %v2381
        %v2386 = vrot.slane %v2384, 4
        %vm2388 = vcmask 1041408
        %v2389 = vsel %vm2388, %v2384, %v2386
        %v2390 = vld [vmem:[%s4] sm:$0x1]
        %v2392 = vlaneseq
        %v2393 = vshrl.u32 %v2392, 7
        %v2394 = vsub.s32 0, %v2393
        %v2395 = vrot.slane %v2390, %v2394
        %v2397 = vadd.f32 %v2389, %v2395
        %2398 = vst [vmem:[%s217] sm:$0xf] %v2397
        %s2399 = sand.u32 %s137, 1
        %s2400 = scalar_lea.sflag [#allocation4], %s2399
        %s2401 = sand.u32 %s137, 1
        %s2402 = smul.addr %s2401, 4
        %s2403 = scalar_lea.vmem [#allocation3], %s2402
        // Predicated region
        $region41: #{forward.1} parent=39 // pred_check
          %p2404 = pneg %p147
        $region42: #{forward.1} parent=39 // pred_check_branch
          %2406 = sbr.rel (%p2404) target = $region44
        $region43: #{forward.1} parent=39 // pred_region
          %s2408 = ssub.s32 64, 64
          %2409 = vsyncadd %s2400, %s2408
          %s2410 = smul.addr %s19, 64
          %s2411 = scalar_lea.hbm %s5, %s2410
          %s2413 = sshll.u32 %s2403, 4
          %s2414 = int_to_ptr.vmem [resolvable:$true] %s2413
          %2416 = dma.vmem_to_hbm [thread:$0]  %s2414, 64, %s2411, %s2400
        $region44: #{forward.1} parent=39 // pred_fallthru
          _
      $region40: #{forward.1} parent=5 // pred_fallthru
        _
      %p2417 = scmp.le.s32.totalorder 2, %s14
      // Predicated region
      $region45: #{forward.1} parent=5 // pred_check
        %p2418 = pneg %p2417
      $region46: #{forward.1} parent=5 // pred_check_branch
        %2420 = sbr.rel (%p2418) target = $region48
      $region47: #{forward.1} parent=5 // pred_region
        %s2421 = ssub.s32 %s14, 2
        // Predicated region
        $region49: #{forward.1} parent=47 // pred_check
          %p2422 = pneg %p153
        $region50: #{forward.1} parent=47 // pred_check_branch
          %2424 = sbr.rel (%p2422) target = $region52
        $region51: #{forward.1} parent=47 // pred_region
          %s2425 = sand.u32 %s138, 1
          %s2426 = scalar_lea.sflag [#allocation4], %s2425
          %s2427 = sand.u32 %s138, 1
          %s2428 = smul.addr %s2427, 4
          %s2429 = scalar_lea.vmem [#allocation3], %s2428
          %2430 = dma.done %s2426, 64
        $region52: #{forward.1} parent=47 // pred_fallthru
          _
      $region48: #{forward.1} parent=5 // pred_fallthru
        _
    $region6: #{forward.1} parent=1 // loop_footer
      %s18 = sadd.s32 1, %s14
    $region7: #{forward.1} parent=1 // loop_footer_branch
      %13 = sbr.rel target = $region3
    $region8: #{forward.1} parent=1 // loop_exit
      _
    %2431 = vsyncpa [#allocation4], 1
    %s2432 = scalar_lea.sflag [#allocation4], 1
    %2433 = vsyncpa %s2432, 1

</llo_original>
